<compile_context>
chip_gen: v7x
topology: tpu7x:2x2x1
jax: 0.10.0
libtpu: 0.0.40
codegen_flags: <defaults>
</compile_context>

<pallas_src>
import functools

import jax
import jax.numpy as jnp
from jax.experimental import pallas as pl
from jax.experimental.pallas import tpu as pltpu

IMAGE_SIZE = 32 * 32   # 1024
H_DIM = 100
Z_DIM = 4

H_PAD = 128            # lane-aligned hidden dim
Z_PAD = 128            # lane-aligned latent dim
NUM_BIAS_ROWS = 10     # enc0, enc1-3, dec0-2, fused mu/logvar, fc3, out


def _round_up(n, m):
    return (n + m - 1) // m * m


# --------------------------------------------------------------------------- #
# Kernel
# --------------------------------------------------------------------------- #
def vae_mlp_kernel(
    x_ref, eps_ref,                       # activations (batch-tiled; x is bf16)
    w_in_ref, w_hid_ref, w_ml_ref,        # packed bf16 weights
    w_z_ref, w_out_ref,
    b_ref,                                # packed f32 biases [10, 1024]
    recon_ref, ml_ref,                    # outputs (batch-tiled)
):
    f32 = jnp.float32
    bf16 = jnp.bfloat16

    def bias(row, width):
        # static slice of the packed bias slab -> (1, width), broadcasts over rows
        return b_ref[row:row + 1, 0:width]

    def dense(h, w, brow, width, relu):
        acc = jnp.dot(h.astype(bf16), w, preferred_element_type=f32)
        acc = acc + bias(brow, width)
        return jnp.maximum(acc, 0.0) if relu else acc

    x = x_ref[...]                                            # (TB, 1024) bf16

    # ----- encoder: 4x (Linear + ReLU) -----
    h = dense(x, w_in_ref[...], 0, H_PAD, True)
    h = dense(h, w_hid_ref[0], 1, H_PAD, True)
    h = dense(h, w_hid_ref[1], 2, H_PAD, True)
    h = dense(h, w_hid_ref[2], 3, H_PAD, True)

    # ----- bottleneck: fused fc1 (mu) + fc2 (logvar) in one matmul -----
    ml = dense(h, w_ml_ref[...], 7, 2 * Z_PAD, False)         # (TB, 256)
    mu = ml[:, :Z_PAD]
    logvar = ml[:, Z_PAD:]
    std = jnp.exp(0.5 * logvar)
    z = mu + std * eps_ref[...]                               # (TB, 128)

    # ----- fc3 then decoder: 3x (Linear + ReLU), Linear + Sigmoid -----
    d = dense(z, w_z_ref[...], 8, H_PAD, False)
    d = dense(d, w_hid_ref[3], 4, H_PAD, True)
    d = dense(d, w_hid_ref[4], 5, H_PAD, True)
    d = dense(d, w_hid_ref[5], 6, H_PAD, True)
    logits = dense(d, w_out_ref[...], 9, IMAGE_SIZE, False)   # (TB, 1024)

    # sigmoid = exp on EUP + approx reciprocal on EUP; clip keeps exact [0, 1]
    recon = pl.reciprocal(1.0 + jnp.exp(-logits), approx=True)
    recon_ref[...] = jnp.clip(recon, 0.0, 1.0).astype(recon_ref.dtype)
    ml_ref[...] = ml.astype(ml_ref.dtype)


# --------------------------------------------------------------------------- #
# Parameter init (PyTorch-style) + packing into padded bf16 tensors
# --------------------------------------------------------------------------- #
def init_raw_params(key, image_size=IMAGE_SIZE, h_dim=H_DIM, z_dim=Z_DIM):
    def lin(k, fin, fout):
        kw, kb = jax.random.split(k)
        bound = 1.0 / (fin ** 0.5)
        w = jax.random.uniform(kw, (fin, fout), jnp.float32, -bound, bound)
        b = jax.random.uniform(kb, (fout,), jnp.float32, -bound, bound)
        return w, b

    keys = jax.random.split(key, 11)
    params = []
    params += lin(keys[0], image_size, h_dim)        # encoder 0
    params += lin(keys[1], h_dim, h_dim)             # encoder 1
    params += lin(keys[2], h_dim, h_dim)             # encoder 2
    params += lin(keys[3], h_dim, h_dim)             # encoder 3
    params += lin(keys[4], h_dim, z_dim)             # fc1 (mu)
    params += lin(keys[5], h_dim, z_dim)             # fc2 (logvar)
    params += lin(keys[6], z_dim, h_dim)             # fc3
    params += lin(keys[7], h_dim, h_dim)             # decoder 0
    params += lin(keys[8], h_dim, h_dim)             # decoder 1
    params += lin(keys[9], h_dim, h_dim)             # decoder 2
    params += lin(keys[10], h_dim, image_size)       # decoder 3
    return tuple(params)


def _pad2(w, rows, cols):
    out = jnp.zeros((rows, cols), w.dtype)
    return out.at[: w.shape[0], : w.shape[1]].set(w)


def pack_params(raw):
    (we0, be0, we1, be1, we2, be2, we3, be3,
     wmu, bmu, wlv, blv, wz, bz,
     wd0, bd0, wd1, bd1, wd2, bd2, wd3, bd3) = raw

    w_in = _pad2(we0, IMAGE_SIZE, H_PAD).astype(jnp.bfloat16)
    w_hid = jnp.stack(
        [_pad2(w, H_PAD, H_PAD) for w in (we1, we2, we3, wd0, wd1, wd2)]
    ).astype(jnp.bfloat16)                                     # [6, 128, 128]
    w_ml = jnp.concatenate(
        [_pad2(wmu, H_DIM, Z_PAD), _pad2(wlv, H_DIM, Z_PAD)], axis=1
    )
    w_ml = _pad2(w_ml, H_PAD, 2 * Z_PAD).astype(jnp.bfloat16)  # [128, 256]
    w_z = _pad2(wz, Z_PAD, H_PAD).astype(jnp.bfloat16)         # [128, 128]
    w_out = _pad2(wd3, H_PAD, IMAGE_SIZE).astype(jnp.bfloat16)  # [128, 1024]

    b = jnp.zeros((NUM_BIAS_ROWS, IMAGE_SIZE), jnp.float32)
    b = b.at[0, :H_DIM].set(be0)
    for r, bv in zip(range(1, 7), (be1, be2, be3, bd0, bd1, bd2)):
        b = b.at[r, :H_DIM].set(bv)
    b = b.at[7, :Z_DIM].set(bmu)
    b = b.at[7, Z_PAD:Z_PAD + Z_DIM].set(blv)
    b = b.at[8, :H_DIM].set(bz)
    b = b.at[9, :].set(bd3)

    return (w_in, w_hid, w_ml, w_z, w_out, b)


# --------------------------------------------------------------------------- #
# Wrapper
# --------------------------------------------------------------------------- #
@functools.partial(jax.jit, static_argnames=())
def vae_mlp_forward(x, eps, w_in, w_hid, w_ml, w_z, w_out, b):
    """Returns (recon [B, image_size], mu [B, z_dim], logvar [B, z_dim])."""
    B = x.shape[0]

    # Batch tile: single tile for small B, 256-row tiles otherwise.  With >=2
    # tiles the "parallel" grid axis lets v7x's 2 TensorCores split the batch;
    # weights stay resident via constant index_maps, activation tiles pipeline.
    if B <= 256:
        TB = max(8, _round_up(B, 8))
    else:
        TB = 256
    B_pad = _round_up(B, TB)

    # x is consumed as a bf16 MXU operand inside the kernel; cast here to halve
    # the dominant input HBM traffic (identical numerics to in-kernel cast).
    x_p = jnp.zeros((B_pad, IMAGE_SIZE), jnp.bfloat16)
    x_p = x_p.at[:B, :].set(x.astype(jnp.bfloat16))
    eps_p = jnp.zeros((B_pad, Z_PAD), jnp.float32).at[:B, :eps.shape[1]].set(eps)

    grid = (B_pad // TB,)

    flops = 2 * B_pad * (IMAGE_SIZE * H_PAD + 6 * H_PAD * H_PAD
                         + H_PAD * 2 * Z_PAD + Z_PAD * H_PAD + H_PAD * IMAGE_SIZE)
    transcendentals = B_pad * (Z_PAD + 2 * IMAGE_SIZE)
    bytes_accessed = (
        2 * (w_in.size + w_hid.size + w_ml.size + w_z.size + w_out.size)  # bf16
        + 4 * b.size
        + 2 * B_pad * IMAGE_SIZE                      # x (bf16 in)
        + 4 * B_pad * (IMAGE_SIZE + Z_PAD + 2 * Z_PAD)  # recon, eps, ml (f32)
    )

    recon, ml = pl.pallas_call(
        vae_mlp_kernel,
        out_shape=(
            jax.ShapeDtypeStruct((B_pad, IMAGE_SIZE), jnp.float32),   # recon
            jax.ShapeDtypeStruct((B_pad, 2 * Z_PAD), jnp.float32),    # mu|logvar
        ),
        grid_spec=pltpu.PrefetchScalarGridSpec(
            num_scalar_prefetch=0,
            grid=grid,
            in_specs=[
                pl.BlockSpec((TB, IMAGE_SIZE), lambda i: (i, 0)),         # x
                pl.BlockSpec((TB, Z_PAD), lambda i: (i, 0)),              # eps
                pl.BlockSpec((IMAGE_SIZE, H_PAD), lambda i: (0, 0)),      # w_in
                pl.BlockSpec((6, H_PAD, H_PAD), lambda i: (0, 0, 0)),     # w_hid
                pl.BlockSpec((H_PAD, 2 * Z_PAD), lambda i: (0, 0)),       # w_ml
                pl.BlockSpec((Z_PAD, H_PAD), lambda i: (0, 0)),           # w_z
                pl.BlockSpec((H_PAD, IMAGE_SIZE), lambda i: (0, 0)),      # w_out
                pl.BlockSpec((NUM_BIAS_ROWS, IMAGE_SIZE), lambda i: (0, 0)),  # b
            ],
            out_specs=[
                pl.BlockSpec((TB, IMAGE_SIZE), lambda i: (i, 0)),
                pl.BlockSpec((TB, 2 * Z_PAD), lambda i: (i, 0)),
            ],
        ),
        compiler_params=pltpu.CompilerParams(
            dimension_semantics=("parallel",),
            vmem_limit_bytes=32 << 20,
        ),
        cost_estimate=pl.CostEstimate(
            flops=flops,
            transcendentals=transcendentals,
            bytes_accessed=bytes_accessed,
        ),
    )(x_p, eps_p, w_in, w_hid, w_ml, w_z, w_out, b)

    mu = ml[:B, :Z_DIM]
    logvar = ml[:B, Z_PAD:Z_PAD + Z_DIM]
    return recon[:B], mu, logvar


# --------------------------------------------------------------------------- #
# Pure-JAX reference (f32, unpadded) for a loose correctness check
# --------------------------------------------------------------------------- #
def vae_mlp_reference(x, eps, raw):
    (we0, be0, we1, be1, we2, be2, we3, be3,
     wmu, bmu, wlv, blv, wz, bz,
     wd0, bd0, wd1, bd1, wd2, bd2, wd3, bd3) = raw
    relu = lambda t: jnp.maximum(t, 0.0)
    h = relu(x @ we0 + be0)
    h = relu(h @ we1 + be1)
    h = relu(h @ we2 + be2)
    h = relu(h @ we3 + be3)
    mu = h @ wmu + bmu
    logvar = h @ wlv + blv
    z = mu + jnp.exp(0.5 * logvar) * eps
    d = z @ wz + bz
    d = relu(d @ wd0 + bd0)
    d = relu(d @ wd1 + bd1)
    d = relu(d @ wd2 + bd2)
    recon = jax.nn.sigmoid(d @ wd3 + bd3)
    return recon, mu, logvar


if __name__ == "__main__":
    key = jax.random.PRNGKey(0)
    k_param, k_x, k_eps = jax.random.split(key, 3)

    B = 8
    raw = init_raw_params(k_param)
    packed = pack_params(raw)
    x = jax.random.uniform(k_x, (B, IMAGE_SIZE), jnp.float32)   # flattened 32x32
    eps = jax.random.normal(k_eps, (B, Z_DIM), jnp.float32)     # reparam noise

    recon, mu, logvar = vae_mlp_forward(x, eps, *packed)
    jax.block_until_ready((recon, mu, logvar))

    assert recon.shape == (B, IMAGE_SIZE)
    assert mu.shape == (B, Z_DIM)
    assert logvar.shape == (B, Z_DIM)
    assert bool(jnp.all(jnp.isfinite(recon)))
    assert bool(jnp.all((recon >= 0.0) & (recon <= 1.0)))

    # Loose check against f32 reference (kernel uses bf16 MXU operands).
    r_ref, mu_ref, lv_ref = vae_mlp_reference(x, eps, raw)
    assert bool(jnp.max(jnp.abs(recon - r_ref)) < 0.1)
    assert bool(jnp.max(jnp.abs(mu - mu_ref)) < 0.1)
    assert bool(jnp.max(jnp.abs(logvar - lv_ref)) < 0.1)

    print("KERNEL_OK")
</pallas_src>

<mosaic_0001>
module attributes {stable_mosaic.version = 11 : i64} {
  func.func @vae_mlp_kernel(%arg0: i32, %arg1: memref<8x1024xbf16, #tpu.memory_space<vmem>>, %arg2: memref<8x128xf32, #tpu.memory_space<vmem>>, %arg3: memref<1024x128xbf16, #tpu.memory_space<vmem>>, %arg4: memref<6x128x128xbf16, #tpu.memory_space<vmem>>, %arg5: memref<128x256xbf16, #tpu.memory_space<vmem>>, %arg6: memref<128x128xbf16, #tpu.memory_space<vmem>>, %arg7: memref<128x1024xbf16, #tpu.memory_space<vmem>>, %arg8: memref<10x1024xf32, #tpu.memory_space<vmem>>, %arg9: memref<8x1024xf32, #tpu.memory_space<vmem>>, %arg10: memref<8x256xf32, #tpu.memory_space<vmem>>) attributes {dimension_semantics = [#tpu.dimension_semantics<parallel>], iteration_bounds = array<i64: 1>, scalar_prefetch = 0 : i64, scratch_operands = 0 : i64, tpu.core_type = #tpu.core_type<tc>, window_params = [{transform_indices = @transform_0, window_bounds = array<i64: 8, 1024>}, {transform_indices = @transform_1, window_bounds = array<i64: 8, 128>}, {pipeline_mode = #tpu.pipeline_mode<synchronous>, transform_indices = @transform_2, window_bounds = array<i64: 1024, 128>}, {pipeline_mode = #tpu.pipeline_mode<synchronous>, transform_indices = @transform_3, window_bounds = array<i64: 6, 128, 128>}, {pipeline_mode = #tpu.pipeline_mode<synchronous>, transform_indices = @transform_4, window_bounds = array<i64: 128, 256>}, {pipeline_mode = #tpu.pipeline_mode<synchronous>, transform_indices = @transform_5, window_bounds = array<i64: 128, 128>}, {pipeline_mode = #tpu.pipeline_mode<synchronous>, transform_indices = @transform_6, window_bounds = array<i64: 128, 1024>}, {pipeline_mode = #tpu.pipeline_mode<synchronous>, transform_indices = @transform_7, window_bounds = array<i64: 10, 1024>}, {transform_indices = @transform_8, window_bounds = array<i64: 8, 1024>}, {transform_indices = @transform_9, window_bounds = array<i64: 8, 256>}]} {
    %c0 = arith.constant 0 : index
    %c0_0 = arith.constant 0 : index
    %0 = vector.load %arg1[%c0, %c0_0] : memref<8x1024xbf16, #tpu.memory_space<vmem>>, vector<8x1024xbf16>
    %c0_1 = arith.constant 0 : index
    %c0_2 = arith.constant 0 : index
    %1 = vector.load %arg3[%c0_1, %c0_2] : memref<1024x128xbf16, #tpu.memory_space<vmem>>, vector<1024x128xbf16>
    %cst = arith.constant dense<0.000000e+00> : vector<8x128xf32>
    %2 = tpu.matmul %0, %1, %cst {dimension_numbers = #tpu.dot_dimension_numbers<[1], [0], [0], [1], [0, 0, 1, 1], [], []>} : vector<8x1024xbf16>, vector<1024x128xbf16>, vector<8x128xf32> -> vector<8x128xf32>
    %c0_3 = arith.constant 0 : index
    %c0_4 = arith.constant 0 : index
    %3 = vector.load %arg8[%c0_3, %c0_4] : memref<10x1024xf32, #tpu.memory_space<vmem>>, vector<1x128xf32>
    %4 = vector.broadcast %3 : vector<1x128xf32> to vector<8x128xf32>
    %5 = arith.addf %2, %4 : vector<8x128xf32>
    %cst_5 = arith.constant 0.000000e+00 : f32
    %6 = vector.broadcast %cst_5 : f32 to vector<8x128xf32>
    %7 = arith.maximumf %5, %6 : vector<8x128xf32>
    %c0_6 = arith.constant 0 : index
    %c0_7 = arith.constant 0 : index
    %c0_8 = arith.constant 0 : index
    %8 = vector.load %arg4[%c0_6, %c0_7, %c0_8] : memref<6x128x128xbf16, #tpu.memory_space<vmem>>, vector<1x128x128xbf16>
    %9 = vector.shape_cast %8 : vector<1x128x128xbf16> to vector<128x128xbf16>
    %10 = arith.truncf %7 : vector<8x128xf32> to vector<8x128xbf16>
    %cst_9 = arith.constant dense<0.000000e+00> : vector<8x128xf32>
    %11 = tpu.matmul %10, %9, %cst_9 {dimension_numbers = #tpu.dot_dimension_numbers<[1], [0], [0], [1], [0, 0, 1, 1], [], []>} : vector<8x128xbf16>, vector<128x128xbf16>, vector<8x128xf32> -> vector<8x128xf32>
    %c1 = arith.constant 1 : index
    %c0_10 = arith.constant 0 : index
    %12 = vector.load %arg8[%c1, %c0_10] : memref<10x1024xf32, #tpu.memory_space<vmem>>, vector<1x128xf32>
    %13 = vector.broadcast %12 : vector<1x128xf32> to vector<8x128xf32>
    %14 = arith.addf %11, %13 : vector<8x128xf32>
    %cst_11 = arith.constant 0.000000e+00 : f32
    %15 = vector.broadcast %cst_11 : f32 to vector<8x128xf32>
    %16 = arith.maximumf %14, %15 : vector<8x128xf32>
    %c1_12 = arith.constant 1 : index
    %c0_13 = arith.constant 0 : index
    %c0_14 = arith.constant 0 : index
    %17 = vector.load %arg4[%c1_12, %c0_13, %c0_14] : memref<6x128x128xbf16, #tpu.memory_space<vmem>>, vector<1x128x128xbf16>
    %18 = vector.shape_cast %17 : vector<1x128x128xbf16> to vector<128x128xbf16>
    %19 = arith.truncf %16 : vector<8x128xf32> to vector<8x128xbf16>
    %cst_15 = arith.constant dense<0.000000e+00> : vector<8x128xf32>
    %20 = tpu.matmul %19, %18, %cst_15 {dimension_numbers = #tpu.dot_dimension_numbers<[1], [0], [0], [1], [0, 0, 1, 1], [], []>} : vector<8x128xbf16>, vector<128x128xbf16>, vector<8x128xf32> -> vector<8x128xf32>
    %c2 = arith.constant 2 : index
    %c0_16 = arith.constant 0 : index
    %21 = vector.load %arg8[%c2, %c0_16] : memref<10x1024xf32, #tpu.memory_space<vmem>>, vector<1x128xf32>
    %22 = vector.broadcast %21 : vector<1x128xf32> to vector<8x128xf32>
    %23 = arith.addf %20, %22 : vector<8x128xf32>
    %cst_17 = arith.constant 0.000000e+00 : f32
    %24 = vector.broadcast %cst_17 : f32 to vector<8x128xf32>
    %25 = arith.maximumf %23, %24 : vector<8x128xf32>
    %c2_18 = arith.constant 2 : index
    %c0_19 = arith.constant 0 : index
    %c0_20 = arith.constant 0 : index
    %26 = vector.load %arg4[%c2_18, %c0_19, %c0_20] : memref<6x128x128xbf16, #tpu.memory_space<vmem>>, vector<1x128x128xbf16>
    %27 = vector.shape_cast %26 : vector<1x128x128xbf16> to vector<128x128xbf16>
    %28 = arith.truncf %25 : vector<8x128xf32> to vector<8x128xbf16>
    %cst_21 = arith.constant dense<0.000000e+00> : vector<8x128xf32>
    %29 = tpu.matmul %28, %27, %cst_21 {dimension_numbers = #tpu.dot_dimension_numbers<[1], [0], [0], [1], [0, 0, 1, 1], [], []>} : vector<8x128xbf16>, vector<128x128xbf16>, vector<8x128xf32> -> vector<8x128xf32>
    %c3 = arith.constant 3 : index
    %c0_22 = arith.constant 0 : index
    %30 = vector.load %arg8[%c3, %c0_22] : memref<10x1024xf32, #tpu.memory_space<vmem>>, vector<1x128xf32>
    %31 = vector.broadcast %30 : vector<1x128xf32> to vector<8x128xf32>
    %32 = arith.addf %29, %31 : vector<8x128xf32>
    %cst_23 = arith.constant 0.000000e+00 : f32
    %33 = vector.broadcast %cst_23 : f32 to vector<8x128xf32>
    %34 = arith.maximumf %32, %33 : vector<8x128xf32>
    %c0_24 = arith.constant 0 : index
    %c0_25 = arith.constant 0 : index
    %35 = vector.load %arg5[%c0_24, %c0_25] : memref<128x256xbf16, #tpu.memory_space<vmem>>, vector<128x256xbf16>
    %36 = arith.truncf %34 : vector<8x128xf32> to vector<8x128xbf16>
    %cst_26 = arith.constant dense<0.000000e+00> : vector<8x256xf32>
    %37 = tpu.matmul %36, %35, %cst_26 {dimension_numbers = #tpu.dot_dimension_numbers<[1], [0], [0], [1], [0, 0, 1, 1], [], []>} : vector<8x128xbf16>, vector<128x256xbf16>, vector<8x256xf32> -> vector<8x256xf32>
    %c7 = arith.constant 7 : index
    %c0_27 = arith.constant 0 : index
    %38 = vector.load %arg8[%c7, %c0_27] : memref<10x1024xf32, #tpu.memory_space<vmem>>, vector<1x256xf32>
    %39 = vector.broadcast %38 : vector<1x256xf32> to vector<8x256xf32>
    %40 = arith.addf %37, %39 : vector<8x256xf32>
    %41 = vector.extract_strided_slice %40 {offsets = [0, 0], sizes = [8, 128], strides = [1, 1]} : vector<8x256xf32> to vector<8x128xf32>
    %42 = vector.extract_strided_slice %40 {offsets = [0, 128], sizes = [8, 128], strides = [1, 1]} : vector<8x256xf32> to vector<8x128xf32>
    %cst_28 = arith.constant 5.000000e-01 : f32
    %43 = vector.broadcast %cst_28 : f32 to vector<8x128xf32>
    %44 = arith.mulf %43, %42 : vector<8x128xf32>
    %45 = math.exp %44 : vector<8x128xf32>
    %c0_29 = arith.constant 0 : index
    %c0_30 = arith.constant 0 : index
    %46 = vector.load %arg2[%c0_29, %c0_30] : memref<8x128xf32, #tpu.memory_space<vmem>>, vector<8x128xf32>
    %47 = arith.mulf %45, %46 : vector<8x128xf32>
    %48 = arith.addf %41, %47 : vector<8x128xf32>
    %c0_31 = arith.constant 0 : index
    %c0_32 = arith.constant 0 : index
    %49 = vector.load %arg6[%c0_31, %c0_32] : memref<128x128xbf16, #tpu.memory_space<vmem>>, vector<128x128xbf16>
    %50 = arith.truncf %48 : vector<8x128xf32> to vector<8x128xbf16>
    %cst_33 = arith.constant dense<0.000000e+00> : vector<8x128xf32>
    %51 = tpu.matmul %50, %49, %cst_33 {dimension_numbers = #tpu.dot_dimension_numbers<[1], [0], [0], [1], [0, 0, 1, 1], [], []>} : vector<8x128xbf16>, vector<128x128xbf16>, vector<8x128xf32> -> vector<8x128xf32>
    %c8 = arith.constant 8 : index
    %c0_34 = arith.constant 0 : index
    %52 = vector.load %arg8[%c8, %c0_34] : memref<10x1024xf32, #tpu.memory_space<vmem>>, vector<1x128xf32>
    %53 = vector.broadcast %52 : vector<1x128xf32> to vector<8x128xf32>
    %54 = arith.addf %51, %53 : vector<8x128xf32>
    %c3_35 = arith.constant 3 : index
    %c0_36 = arith.constant 0 : index
    %c0_37 = arith.constant 0 : index
    %55 = vector.load %arg4[%c3_35, %c0_36, %c0_37] : memref<6x128x128xbf16, #tpu.memory_space<vmem>>, vector<1x128x128xbf16>
    %56 = vector.shape_cast %55 : vector<1x128x128xbf16> to vector<128x128xbf16>
    %57 = arith.truncf %54 : vector<8x128xf32> to vector<8x128xbf16>
    %cst_38 = arith.constant dense<0.000000e+00> : vector<8x128xf32>
    %58 = tpu.matmul %57, %56, %cst_38 {dimension_numbers = #tpu.dot_dimension_numbers<[1], [0], [0], [1], [0, 0, 1, 1], [], []>} : vector<8x128xbf16>, vector<128x128xbf16>, vector<8x128xf32> -> vector<8x128xf32>
    %c4 = arith.constant 4 : index
    %c0_39 = arith.constant 0 : index
    %59 = vector.load %arg8[%c4, %c0_39] : memref<10x1024xf32, #tpu.memory_space<vmem>>, vector<1x128xf32>
    %60 = vector.broadcast %59 : vector<1x128xf32> to vector<8x128xf32>
    %61 = arith.addf %58, %60 : vector<8x128xf32>
    %cst_40 = arith.constant 0.000000e+00 : f32
    %62 = vector.broadcast %cst_40 : f32 to vector<8x128xf32>
    %63 = arith.maximumf %61, %62 : vector<8x128xf32>
    %c4_41 = arith.constant 4 : index
    %c0_42 = arith.constant 0 : index
    %c0_43 = arith.constant 0 : index
    %64 = vector.load %arg4[%c4_41, %c0_42, %c0_43] : memref<6x128x128xbf16, #tpu.memory_space<vmem>>, vector<1x128x128xbf16>
    %65 = vector.shape_cast %64 : vector<1x128x128xbf16> to vector<128x128xbf16>
    %66 = arith.truncf %63 : vector<8x128xf32> to vector<8x128xbf16>
    %cst_44 = arith.constant dense<0.000000e+00> : vector<8x128xf32>
    %67 = tpu.matmul %66, %65, %cst_44 {dimension_numbers = #tpu.dot_dimension_numbers<[1], [0], [0], [1], [0, 0, 1, 1], [], []>} : vector<8x128xbf16>, vector<128x128xbf16>, vector<8x128xf32> -> vector<8x128xf32>
    %c5 = arith.constant 5 : index
    %c0_45 = arith.constant 0 : index
    %68 = vector.load %arg8[%c5, %c0_45] : memref<10x1024xf32, #tpu.memory_space<vmem>>, vector<1x128xf32>
    %69 = vector.broadcast %68 : vector<1x128xf32> to vector<8x128xf32>
    %70 = arith.addf %67, %69 : vector<8x128xf32>
    %cst_46 = arith.constant 0.000000e+00 : f32
    %71 = vector.broadcast %cst_46 : f32 to vector<8x128xf32>
    %72 = arith.maximumf %70, %71 : vector<8x128xf32>
    %c5_47 = arith.constant 5 : index
    %c0_48 = arith.constant 0 : index
    %c0_49 = arith.constant 0 : index
    %73 = vector.load %arg4[%c5_47, %c0_48, %c0_49] : memref<6x128x128xbf16, #tpu.memory_space<vmem>>, vector<1x128x128xbf16>
    %74 = vector.shape_cast %73 : vector<1x128x128xbf16> to vector<128x128xbf16>
    %75 = arith.truncf %72 : vector<8x128xf32> to vector<8x128xbf16>
    %cst_50 = arith.constant dense<0.000000e+00> : vector<8x128xf32>
    %76 = tpu.matmul %75, %74, %cst_50 {dimension_numbers = #tpu.dot_dimension_numbers<[1], [0], [0], [1], [0, 0, 1, 1], [], []>} : vector<8x128xbf16>, vector<128x128xbf16>, vector<8x128xf32> -> vector<8x128xf32>
    %c6 = arith.constant 6 : index
    %c0_51 = arith.constant 0 : index
    %77 = vector.load %arg8[%c6, %c0_51] : memref<10x1024xf32, #tpu.memory_space<vmem>>, vector<1x128xf32>
    %78 = vector.broadcast %77 : vector<1x128xf32> to vector<8x128xf32>
    %79 = arith.addf %76, %78 : vector<8x128xf32>
    %cst_52 = arith.constant 0.000000e+00 : f32
    %80 = vector.broadcast %cst_52 : f32 to vector<8x128xf32>
    %81 = arith.maximumf %79, %80 : vector<8x128xf32>
    %c0_53 = arith.constant 0 : index
    %c0_54 = arith.constant 0 : index
    %82 = vector.load %arg7[%c0_53, %c0_54] : memref<128x1024xbf16, #tpu.memory_space<vmem>>, vector<128x1024xbf16>
    %83 = arith.truncf %81 : vector<8x128xf32> to vector<8x128xbf16>
    %cst_55 = arith.constant dense<0.000000e+00> : vector<8x1024xf32>
    %84 = tpu.matmul %83, %82, %cst_55 {dimension_numbers = #tpu.dot_dimension_numbers<[1], [0], [0], [1], [0, 0, 1, 1], [], []>} : vector<8x128xbf16>, vector<128x1024xbf16>, vector<8x1024xf32> -> vector<8x1024xf32>
    %c9 = arith.constant 9 : index
    %c0_56 = arith.constant 0 : index
    %85 = vector.load %arg8[%c9, %c0_56] : memref<10x1024xf32, #tpu.memory_space<vmem>>, vector<1x1024xf32>
    %86 = vector.broadcast %85 : vector<1x1024xf32> to vector<8x1024xf32>
    %87 = arith.addf %84, %86 : vector<8x1024xf32>
    %cst_57 = arith.constant 0.000000e+00 : f32
    %88 = vector.broadcast %cst_57 : f32 to vector<8x1024xf32>
    %89 = arith.subf %88, %87 : vector<8x1024xf32>
    %90 = math.exp %89 : vector<8x1024xf32>
    %cst_58 = arith.constant 1.000000e+00 : f32
    %91 = vector.broadcast %cst_58 : f32 to vector<8x1024xf32>
    %92 = arith.addf %91, %90 : vector<8x1024xf32>
    %93 = tpu.reciprocal %92 {approx = true} : vector<8x1024xf32> -> vector<8x1024xf32>
    %cst_59 = arith.constant 0.000000e+00 : f32
    %cst_60 = arith.constant 1.000000e+00 : f32
    %94 = vector.broadcast %cst_59 : f32 to vector<8x1024xf32>
    %95 = arith.maximumf %94, %93 : vector<8x1024xf32>
    %96 = vector.broadcast %cst_60 : f32 to vector<8x1024xf32>
    %97 = arith.minimumf %96, %95 : vector<8x1024xf32>
    %c0_61 = arith.constant 0 : index
    %c0_62 = arith.constant 0 : index
    %98 = vector.load %arg9[%c0_61, %c0_62] : memref<8x1024xf32, #tpu.memory_space<vmem>>, vector<8x1024xf32>
    tpu.vector_store %arg9[%c0_61, %c0_62], %97 {strides = array<i32>} : memref<8x1024xf32, #tpu.memory_space<vmem>>, vector<8x1024xf32>,
    %c0_63 = arith.constant 0 : index
    %c0_64 = arith.constant 0 : index
    %99 = vector.load %arg10[%c0_63, %c0_64] : memref<8x256xf32, #tpu.memory_space<vmem>>, vector<8x256xf32>
    tpu.vector_store %arg10[%c0_63, %c0_64], %40 {strides = array<i32>} : memref<8x256xf32, #tpu.memory_space<vmem>>, vector<8x256xf32>,
    return
  }
  func.func @transform_0(%arg0: i32) -> (i32, i32) {
    %c0_i32 = arith.constant 0 : i32
    %c0_i32_0 = arith.constant 0 : i32
    return %arg0, %c0_i32 : i32, i32
  }
  func.func @transform_1(%arg0: i32) -> (i32, i32) {
    %c0_i32 = arith.constant 0 : i32
    %c0_i32_0 = arith.constant 0 : i32
    return %arg0, %c0_i32 : i32, i32
  }
  func.func @transform_2(%arg0: i32) -> (i32, i32) {
    %c0_i32 = arith.constant 0 : i32
    %c0_i32_0 = arith.constant 0 : i32
    %c0_i32_1 = arith.constant 0 : i32
    return %c0_i32, %c0_i32_0 : i32, i32
  }
  func.func @transform_3(%arg0: i32) -> (i32, i32, i32) {
    %c0_i32 = arith.constant 0 : i32
    %c0_i32_0 = arith.constant 0 : i32
    %c0_i32_1 = arith.constant 0 : i32
    %c0_i32_2 = arith.constant 0 : i32
    return %c0_i32, %c0_i32_0, %c0_i32_1 : i32, i32, i32
  }
  func.func @transform_4(%arg0: i32) -> (i32, i32) {
    %c0_i32 = arith.constant 0 : i32
    %c0_i32_0 = arith.constant 0 : i32
    %c0_i32_1 = arith.constant 0 : i32
    return %c0_i32, %c0_i32_0 : i32, i32
  }
  func.func @transform_5(%arg0: i32) -> (i32, i32) {
    %c0_i32 = arith.constant 0 : i32
    %c0_i32_0 = arith.constant 0 : i32
    %c0_i32_1 = arith.constant 0 : i32
    return %c0_i32, %c0_i32_0 : i32, i32
  }
  func.func @transform_6(%arg0: i32) -> (i32, i32) {
    %c0_i32 = arith.constant 0 : i32
    %c0_i32_0 = arith.constant 0 : i32
    %c0_i32_1 = arith.constant 0 : i32
    return %c0_i32, %c0_i32_0 : i32, i32
  }
  func.func @transform_7(%arg0: i32) -> (i32, i32) {
    %c0_i32 = arith.constant 0 : i32
    %c0_i32_0 = arith.constant 0 : i32
    %c0_i32_1 = arith.constant 0 : i32
    return %c0_i32, %c0_i32_0 : i32, i32
  }
  func.func @transform_8(%arg0: i32) -> (i32, i32) {
    %c0_i32 = arith.constant 0 : i32
    %c0_i32_0 = arith.constant 0 : i32
    return %arg0, %c0_i32 : i32, i32
  }
  func.func @transform_9(%arg0: i32) -> (i32, i32) {
    %c0_i32 = arith.constant 0 : i32
    %c0_i32_0 = arith.constant 0 : i32
    return %arg0, %c0_i32 : i32, i32
  }
}

</mosaic_0001>

<llo_original>
// kernel: vae_mlp_forward.1
$region0: #{vae_mlp_forward.1}
  #allocation0 [shape = 'u32[]', space=smem, size = 0x4, offset = 0x4, fixed_abs, tag = 'smem constant byte address 0x4 - core index']
  #allocation1 [shape = 'u32[144,128]{1,0:T(1,128)}', space=vmem, size = 0x12000, scoped, tag = 'internal scratch']
  %s0 = inlined_call_operand.vmem [shape: bf16[8,1024], index: 0, kind: input, shape index: {}]
  %s1 = inlined_call_operand.vmem [shape: f32[8,128], index: 1, kind: input, shape index: {}]
  %s2 = inlined_call_operand.hbm [shape: bf16[1024,128], index: 2, kind: input, shape index: {}]
  %s3 = inlined_call_operand.hbm [shape: bf16[6,128,128], index: 3, kind: input, shape index: {}]
  %s4 = inlined_call_operand.vmem [shape: bf16[128,256], index: 4, kind: input, shape index: {}]
  %s5 = inlined_call_operand.hbm [shape: bf16[128,128], index: 5, kind: input, shape index: {}]
  %s6 = inlined_call_operand.hbm [shape: bf16[128,1024], index: 6, kind: input, shape index: {}]
  %s7 = inlined_call_operand.hbm [shape: f32[10,1024], index: 7, kind: input, shape index: {}]
  %s8 = inlined_call_operand.hbm [shape: f32[8,1024], index: 8, kind: output, shape index: {0}]
  %s9 = inlined_call_operand.vmem [shape: f32[8,256], index: 9, kind: output, shape index: {1}]
  %10 = xla_tuple %s8, %s9
  %s11 = sld [smem:[#allocation0]]
  $region70: #{vae_mlp_forward.1} parent=0
    _
  %s13 = ssub.s32 1, %s11
  %s14 = scalar_select 0, %s13, %s11
  $region1: #{vae_mlp_forward.1} parent=0
    #allocation2 [shape = 'u8[262144]{0}', space=vmem, size = 0x40000, scoped, tag = 'input window, operand 2, single buffered']
    #allocation3 [shape = 's32[1]{0}', space=sflag, size = 0x4, scoped, tag = 'scoped memory for vae_mlp_forward.1']
    #allocation4 [shape = 's32[1]{0}', space=sflag, size = 0x4, scoped, tag = 'scoped memory for vae_mlp_forward.1']
    #allocation5 [shape = 'u8[196608]{0}', space=vmem, size = 0x30000, scoped, tag = 'input window, operand 3, single buffered']
    #allocation6 [shape = 's32[1]{0}', space=sflag, size = 0x4, scoped, tag = 'scoped memory for vae_mlp_forward.1']
    #allocation7 [shape = 'u8[32768]{0}', space=vmem, size = 0x8000, scoped, tag = 'input window, operand 5, single buffered']
    #allocation8 [shape = 'u8[262144]{0}', space=vmem, size = 0x40000, scoped, tag = 'input window, operand 6, single buffered']
    #allocation9 [shape = 's32[1]{0}', space=sflag, size = 0x4, scoped, tag = 'scoped memory for vae_mlp_forward.1']
    #allocation10 [shape = 'u8[65536]{0}', space=vmem, size = 0x10000, scoped, tag = 'input window, operand 7, single buffered']
    #allocation11 [shape = 'u8[32768]{0}', space=vmem, size = 0x8000, scoped, tag = 'output window, operand 0, single buffered']
    %15 = vsyncpa [#allocation3], 0
    %16 = vsyncpa [#allocation6], 0
    %17 = vsyncpa [#allocation9], 0
    %18 = vsyncpa [#allocation4], 0
    // Predicated region
    $region2: #{vae_mlp_forward.1} parent=1 // pred_check
      _
    $region3: #{vae_mlp_forward.1} parent=1 // pred_check_branch
      %20 = sbr.rel (0) target = $region5
    $region4: #{vae_mlp_forward.1} parent=1 // pred_region
      _
    $region5: #{vae_mlp_forward.1} parent=1 // pred_fallthru
      _
    // Predicated region
    $region6: #{vae_mlp_forward.1} parent=1 // pred_check
      _
    $region7: #{vae_mlp_forward.1} parent=1 // pred_check_branch
      %22 = sbr.rel (0) target = $region9
    $region8: #{vae_mlp_forward.1} parent=1 // pred_region
      _
    $region9: #{vae_mlp_forward.1} parent=1 // pred_fallthru
      _
    // Predicated region
    $region10: #{vae_mlp_forward.1} parent=1 // pred_check
      _
    $region11: #{vae_mlp_forward.1} parent=1 // pred_check_branch
      %24 = sbr.rel (0) target = $region13
    $region12: #{vae_mlp_forward.1} parent=1 // pred_region
      %s26 = ssub.s32 8192, 8192
      %27 = vsyncadd [#allocation3], %s26
      %s28 = sshll.u32 [#allocation2], 4
      %s29 = int_to_ptr.vmem [resolvable:$true] %s28
      %34 = dma.hbm_to_vmem [thread:$0]  %s2, 8192, %s29, [#allocation3], 64, 64, 4
    $region13: #{vae_mlp_forward.1} parent=1 // pred_fallthru
      _
    // Predicated region
    $region14: #{vae_mlp_forward.1} parent=1 // pred_check
      _
    $region15: #{vae_mlp_forward.1} parent=1 // pred_check_branch
      %36 = sbr.rel (0) target = $region17
    $region16: #{vae_mlp_forward.1} parent=1 // pred_region
      %s38 = ssub.s32 6144, 6144
      %39 = vsyncadd [#allocation6], %s38
      %s40 = sshll.u32 [#allocation5], 4
      %s41 = int_to_ptr.vmem [resolvable:$true] %s40
      %46 = dma.hbm_to_vmem [thread:$0]  %s3, 6144, %s41, [#allocation6], 64, 64, 4
    $region17: #{vae_mlp_forward.1} parent=1 // pred_fallthru
      _
    // Predicated region
    $region18: #{vae_mlp_forward.1} parent=1 // pred_check
      _
    $region19: #{vae_mlp_forward.1} parent=1 // pred_check_branch
      %48 = sbr.rel (0) target = $region21
    $region20: #{vae_mlp_forward.1} parent=1 // pred_region
      _
    $region21: #{vae_mlp_forward.1} parent=1 // pred_fallthru
      _
    // Predicated region
    $region22: #{vae_mlp_forward.1} parent=1 // pred_check
      _
    $region23: #{vae_mlp_forward.1} parent=1 // pred_check_branch
      %50 = sbr.rel (0) target = $region25
    $region24: #{vae_mlp_forward.1} parent=1 // pred_region
      %s52 = ssub.s32 1024, 1024
      %53 = vsyncadd [#allocation6], %s52
      %s54 = sshll.u32 [#allocation7], 4
      %s55 = int_to_ptr.vmem [resolvable:$true] %s54
      %60 = dma.hbm_to_vmem [thread:$0]  %s5, 1024, %s55, [#allocation6], 64, 64, 4
    $region25: #{vae_mlp_forward.1} parent=1 // pred_fallthru
      _
    // Predicated region
    $region26: #{vae_mlp_forward.1} parent=1 // pred_check
      _
    $region27: #{vae_mlp_forward.1} parent=1 // pred_check_branch
      %62 = sbr.rel (0) target = $region29
    $region28: #{vae_mlp_forward.1} parent=1 // pred_region
      %s64 = ssub.s32 8192, 8192
      %65 = vsyncadd [#allocation9], %s64
      %s66 = sshll.u32 [#allocation8], 4
      %s67 = int_to_ptr.vmem [resolvable:$true] %s66
      %72 = dma.hbm_to_vmem [thread:$0]  %s6, 8192, %s67, [#allocation9], 512, 512, 32
    $region29: #{vae_mlp_forward.1} parent=1 // pred_fallthru
      _
    // Predicated region
    $region30: #{vae_mlp_forward.1} parent=1 // pred_check
      _
    $region31: #{vae_mlp_forward.1} parent=1 // pred_check_branch
      %74 = sbr.rel (0) target = $region33
    $region32: #{vae_mlp_forward.1} parent=1 // pred_region
      %s76 = ssub.s32 2048, 2048
      %77 = vsyncadd [#allocation9], %s76
      %s78 = sshll.u32 [#allocation10], 4
      %s79 = int_to_ptr.vmem [resolvable:$true] %s78
      %84 = dma.hbm_to_vmem [thread:$0]  %s7, 2048, %s79, [#allocation9], 1024, 1024, 64
    $region33: #{vae_mlp_forward.1} parent=1 // pred_fallthru
      _
    // Predicated region
    $region34: #{vae_mlp_forward.1} parent=1 // pred_check
      _
    $region35: #{vae_mlp_forward.1} parent=1 // pred_check_branch
      %86 = sbr.rel (0) target = $region37
    $region36: #{vae_mlp_forward.1} parent=1 // pred_region
      %87 = dma.done [#allocation3], 8192
    $region37: #{vae_mlp_forward.1} parent=1 // pred_fallthru
      _
    // Predicated region
    $region38: #{vae_mlp_forward.1} parent=1 // pred_check
      _
    $region39: #{vae_mlp_forward.1} parent=1 // pred_check_branch
      %89 = sbr.rel (0) target = $region41
    $region40: #{vae_mlp_forward.1} parent=1 // pred_region
      %90 = dma.done [#allocation6], 6144
    $region41: #{vae_mlp_forward.1} parent=1 // pred_fallthru
      _
    // Predicated region
    $region42: #{vae_mlp_forward.1} parent=1 // pred_check
      _
    $region43: #{vae_mlp_forward.1} parent=1 // pred_check_branch
      %92 = sbr.rel (0) target = $region45
    $region44: #{vae_mlp_forward.1} parent=1 // pred_region
      %93 = dma.done [#allocation6], 1024
    $region45: #{vae_mlp_forward.1} parent=1 // pred_fallthru
      _
    // Predicated region
    $region46: #{vae_mlp_forward.1} parent=1 // pred_check
      _
    $region47: #{vae_mlp_forward.1} parent=1 // pred_check_branch
      %95 = sbr.rel (0) target = $region49
    $region48: #{vae_mlp_forward.1} parent=1 // pred_region
      %96 = dma.done [#allocation9], 8192
    $region49: #{vae_mlp_forward.1} parent=1 // pred_fallthru
      _
    // Predicated region
    $region50: #{vae_mlp_forward.1} parent=1 // pred_check
      _
    $region51: #{vae_mlp_forward.1} parent=1 // pred_check_branch
      %98 = sbr.rel (0) target = $region53
    $region52: #{vae_mlp_forward.1} parent=1 // pred_region
      %99 = dma.done [#allocation9], 2048
    $region53: #{vae_mlp_forward.1} parent=1 // pred_fallthru
      _
    %v101 = vld [vmem:[%s0] sm:$0xff]
    %v102 = vld [vmem:[%s0 + $0x8] sm:$0xff]
    %v103 = vld [vmem:[%s0 + $0x10] sm:$0xff]
    %v104 = vld [vmem:[%s0 + $0x18] sm:$0xff]
    %v105 = vld [vmem:[#allocation2] sm:$0xf]
    %v106 = vld [vmem:[#allocation2 + $0x4] sm:$0xf]
    %v107 = vld [vmem:[#allocation2 + $0x8] sm:$0xf]
    %v108 = vld [vmem:[#allocation2 + $0xc] sm:$0xf]
    %v109 = vld [vmem:[#allocation2 + $0x10] sm:$0xf]
    %v110 = vld [vmem:[#allocation2 + $0x14] sm:$0xf]
    %v111 = vld [vmem:[#allocation2 + $0x18] sm:$0xf]
    %v112 = vld [vmem:[#allocation2 + $0x1c] sm:$0xf]
    %v113 = vld [vmem:[#allocation2 + $0x20] sm:$0xf]
    %v114 = vld [vmem:[#allocation2 + $0x24] sm:$0xf]
    %v115 = vld [vmem:[#allocation2 + $0x28] sm:$0xf]
    %v116 = vld [vmem:[#allocation2 + $0x2c] sm:$0xf]
    %v117 = vld [vmem:[#allocation2 + $0x30] sm:$0xf]
    %v118 = vld [vmem:[#allocation2 + $0x34] sm:$0xf]
    %v119 = vld [vmem:[#allocation2 + $0x38] sm:$0xf]
    %v120 = vld [vmem:[#allocation2 + $0x3c] sm:$0xf]
    %v121 = vld [vmem:[#allocation2 + $0x40] sm:$0xf]
    %v122 = vld [vmem:[#allocation2 + $0x44] sm:$0xf]
    %v123 = vld [vmem:[#allocation2 + $0x48] sm:$0xf]
    %v124 = vld [vmem:[#allocation2 + $0x4c] sm:$0xf]
    %v125 = vld [vmem:[#allocation2 + $0x50] sm:$0xf]
    %v126 = vld [vmem:[#allocation2 + $0x54] sm:$0xf]
    %v127 = vld [vmem:[#allocation2 + $0x58] sm:$0xf]
    %v128 = vld [vmem:[#allocation2 + $0x5c] sm:$0xf]
    %v129 = vld [vmem:[#allocation2 + $0x60] sm:$0xf]
    %v130 = vld [vmem:[#allocation2 + $0x64] sm:$0xf]
    %v131 = vld [vmem:[#allocation2 + $0x68] sm:$0xf]
    %v132 = vld [vmem:[#allocation2 + $0x6c] sm:$0xf]
    %v133 = vld [vmem:[#allocation2 + $0x70] sm:$0xf]
    %v134 = vld [vmem:[#allocation2 + $0x74] sm:$0xf]
    %v135 = vld [vmem:[#allocation2 + $0x78] sm:$0xf]
    %v136 = vld [vmem:[#allocation2 + $0x7c] sm:$0xf]
    %v137 = vld [vmem:[#allocation2 + $0x80] sm:$0xf]
    %v138 = vld [vmem:[#allocation2 + $0x84] sm:$0xf]
    %v139 = vld [vmem:[#allocation2 + $0x88] sm:$0xf]
    %v140 = vld [vmem:[#allocation2 + $0x8c] sm:$0xf]
    %v141 = vld [vmem:[#allocation2 + $0x90] sm:$0xf]
    %v142 = vld [vmem:[#allocation2 + $0x94] sm:$0xf]
    %v143 = vld [vmem:[#allocation2 + $0x98] sm:$0xf]
    %v144 = vld [vmem:[#allocation2 + $0x9c] sm:$0xf]
    %v145 = vld [vmem:[#allocation2 + $0xa0] sm:$0xf]
    %v146 = vld [vmem:[#allocation2 + $0xa4] sm:$0xf]
    %v147 = vld [vmem:[#allocation2 + $0xa8] sm:$0xf]
    %v148 = vld [vmem:[#allocation2 + $0xac] sm:$0xf]
    %v149 = vld [vmem:[#allocation2 + $0xb0] sm:$0xf]
    %v150 = vld [vmem:[#allocation2 + $0xb4] sm:$0xf]
    %v151 = vld [vmem:[#allocation2 + $0xb8] sm:$0xf]
    %v152 = vld [vmem:[#allocation2 + $0xbc] sm:$0xf]
    %v153 = vld [vmem:[#allocation2 + $0xc0] sm:$0xf]
    %v154 = vld [vmem:[#allocation2 + $0xc4] sm:$0xf]
    %v155 = vld [vmem:[#allocation2 + $0xc8] sm:$0xf]
    %v156 = vld [vmem:[#allocation2 + $0xcc] sm:$0xf]
    %v157 = vld [vmem:[#allocation2 + $0xd0] sm:$0xf]
    %v158 = vld [vmem:[#allocation2 + $0xd4] sm:$0xf]
    %v159 = vld [vmem:[#allocation2 + $0xd8] sm:$0xf]
    %v160 = vld [vmem:[#allocation2 + $0xdc] sm:$0xf]
    %v161 = vld [vmem:[#allocation2 + $0xe0] sm:$0xf]
    %v162 = vld [vmem:[#allocation2 + $0xe4] sm:$0xf]
    %v163 = vld [vmem:[#allocation2 + $0xe8] sm:$0xf]
    %v164 = vld [vmem:[#allocation2 + $0xec] sm:$0xf]
    %v165 = vld [vmem:[#allocation2 + $0xf0] sm:$0xf]
    %v166 = vld [vmem:[#allocation2 + $0xf4] sm:$0xf]
    %v167 = vld [vmem:[#allocation2 + $0xf8] sm:$0xf]
    %v168 = vld [vmem:[#allocation2 + $0xfc] sm:$0xf]
    %v169 = vld [vmem:[#allocation2 + $0x100] sm:$0xf]
    %v170 = vld [vmem:[#allocation2 + $0x104] sm:$0xf]
    %v171 = vld [vmem:[#allocation2 + $0x108] sm:$0xf]
    %v172 = vld [vmem:[#allocation2 + $0x10c] sm:$0xf]
    %v173 = vld [vmem:[#allocation2 + $0x110] sm:$0xf]
    %v174 = vld [vmem:[#allocation2 + $0x114] sm:$0xf]
    %v175 = vld [vmem:[#allocation2 + $0x118] sm:$0xf]
    %v176 = vld [vmem:[#allocation2 + $0x11c] sm:$0xf]
    %v177 = vld [vmem:[#allocation2 + $0x120] sm:$0xf]
    %v178 = vld [vmem:[#allocation2 + $0x124] sm:$0xf]
    %v179 = vld [vmem:[#allocation2 + $0x128] sm:$0xf]
    %v180 = vld [vmem:[#allocation2 + $0x12c] sm:$0xf]
    %v181 = vld [vmem:[#allocation2 + $0x130] sm:$0xf]
    %v182 = vld [vmem:[#allocation2 + $0x134] sm:$0xf]
    %v183 = vld [vmem:[#allocation2 + $0x138] sm:$0xf]
    %v184 = vld [vmem:[#allocation2 + $0x13c] sm:$0xf]
    %v185 = vld [vmem:[#allocation2 + $0x140] sm:$0xf]
    %v186 = vld [vmem:[#allocation2 + $0x144] sm:$0xf]
    %v187 = vld [vmem:[#allocation2 + $0x148] sm:$0xf]
    %v188 = vld [vmem:[#allocation2 + $0x14c] sm:$0xf]
    %v189 = vld [vmem:[#allocation2 + $0x150] sm:$0xf]
    %v190 = vld [vmem:[#allocation2 + $0x154] sm:$0xf]
    %v191 = vld [vmem:[#allocation2 + $0x158] sm:$0xf]
    %v192 = vld [vmem:[#allocation2 + $0x15c] sm:$0xf]
    %v193 = vld [vmem:[#allocation2 + $0x160] sm:$0xf]
    %v194 = vld [vmem:[#allocation2 + $0x164] sm:$0xf]
    %v195 = vld [vmem:[#allocation2 + $0x168] sm:$0xf]
    %v196 = vld [vmem:[#allocation2 + $0x16c] sm:$0xf]
    %v197 = vld [vmem:[#allocation2 + $0x170] sm:$0xf]
    %v198 = vld [vmem:[#allocation2 + $0x174] sm:$0xf]
    %v199 = vld [vmem:[#allocation2 + $0x178] sm:$0xf]
    %v200 = vld [vmem:[#allocation2 + $0x17c] sm:$0xf]
    %v201 = vld [vmem:[#allocation2 + $0x180] sm:$0xf]
    %v202 = vld [vmem:[#allocation2 + $0x184] sm:$0xf]
    %v203 = vld [vmem:[#allocation2 + $0x188] sm:$0xf]
    %v204 = vld [vmem:[#allocation2 + $0x18c] sm:$0xf]
    %v205 = vld [vmem:[#allocation2 + $0x190] sm:$0xf]
    %v206 = vld [vmem:[#allocation2 + $0x194] sm:$0xf]
    %v207 = vld [vmem:[#allocation2 + $0x198] sm:$0xf]
    %v208 = vld [vmem:[#allocation2 + $0x19c] sm:$0xf]
    %v209 = vld [vmem:[#allocation2 + $0x1a0] sm:$0xf]
    %v210 = vld [vmem:[#allocation2 + $0x1a4] sm:$0xf]
    %v211 = vld [vmem:[#allocation2 + $0x1a8] sm:$0xf]
    %v212 = vld [vmem:[#allocation2 + $0x1ac] sm:$0xf]
    %v213 = vld [vmem:[#allocation2 + $0x1b0] sm:$0xf]
    %v214 = vld [vmem:[#allocation2 + $0x1b4] sm:$0xf]
    %v215 = vld [vmem:[#allocation2 + $0x1b8] sm:$0xf]
    %v216 = vld [vmem:[#allocation2 + $0x1bc] sm:$0xf]
    %v217 = vld [vmem:[#allocation2 + $0x1c0] sm:$0xf]
    %v218 = vld [vmem:[#allocation2 + $0x1c4] sm:$0xf]
    %v219 = vld [vmem:[#allocation2 + $0x1c8] sm:$0xf]
    %v220 = vld [vmem:[#allocation2 + $0x1cc] sm:$0xf]
    %v221 = vld [vmem:[#allocation2 + $0x1d0] sm:$0xf]
    %v222 = vld [vmem:[#allocation2 + $0x1d4] sm:$0xf]
    %v223 = vld [vmem:[#allocation2 + $0x1d8] sm:$0xf]
    %v224 = vld [vmem:[#allocation2 + $0x1dc] sm:$0xf]
    %v225 = vld [vmem:[#allocation2 + $0x1e0] sm:$0xf]
    %v226 = vld [vmem:[#allocation2 + $0x1e4] sm:$0xf]
    %v227 = vld [vmem:[#allocation2 + $0x1e8] sm:$0xf]
    %v228 = vld [vmem:[#allocation2 + $0x1ec] sm:$0xf]
    %v229 = vld [vmem:[#allocation2 + $0x1f0] sm:$0xf]
    %v230 = vld [vmem:[#allocation2 + $0x1f4] sm:$0xf]
    %v231 = vld [vmem:[#allocation2 + $0x1f8] sm:$0xf]
    %v232 = vld [vmem:[#allocation2 + $0x1fc] sm:$0xf]
    %v233 = vld [vmem:[#allocation10] ss:$0 sm:$0xff]
    %v238 = vunpack.c.l.b16 %v101
    %v239 = vunpack.c.h.b16 %v101
    %v240 = vunpack.c.l.b16 %v102
    %v241 = vunpack.c.h.b16 %v102
    %v242 = vunpack.c.l.b16 %v103
    %v243 = vunpack.c.h.b16 %v103
    %v244 = vunpack.c.l.b16 %v104
    %v245 = vunpack.c.h.b16 %v104
    %v246 = vpack.c.b16 %v238, %v238
    %v247 = vpack.c.b16 %v239, %v239
    %v248 = vpack.c.b16 %v240, %v240
    %v249 = vpack.c.b16 %v241, %v241
    %v250 = vpack.c.b16 %v242, %v242
    %v251 = vpack.c.b16 %v243, %v243
    %v252 = vpack.c.b16 %v244, %v244
    %v253 = vpack.c.b16 %v245, %v245
    %v390 = vunpack.c.l.b16 %v105
    %v391 = vunpack.c.l.b16 %v106
    %v392 = vunpack.c.l.b16 %v107
    %v393 = vunpack.c.l.b16 %v108
    %v394 = vunpack.c.l.b16 %v109
    %v395 = vunpack.c.l.b16 %v110
    %v396 = vunpack.c.l.b16 %v111
    %v397 = vunpack.c.l.b16 %v112
    %v398 = vunpack.c.l.b16 %v113
    %v399 = vunpack.c.l.b16 %v114
    %v400 = vunpack.c.l.b16 %v115
    %v401 = vunpack.c.l.b16 %v116
    %v402 = vunpack.c.l.b16 %v117
    %v403 = vunpack.c.l.b16 %v118
    %v404 = vunpack.c.l.b16 %v119
    %v405 = vunpack.c.l.b16 %v120
    %v406 = vunpack.c.l.b16 %v121
    %v407 = vunpack.c.l.b16 %v122
    %v408 = vunpack.c.l.b16 %v123
    %v409 = vunpack.c.l.b16 %v124
    %v410 = vunpack.c.l.b16 %v125
    %v411 = vunpack.c.l.b16 %v126
    %v412 = vunpack.c.l.b16 %v127
    %v413 = vunpack.c.l.b16 %v128
    %v414 = vunpack.c.l.b16 %v129
    %v415 = vunpack.c.l.b16 %v130
    %v416 = vunpack.c.l.b16 %v131
    %v417 = vunpack.c.l.b16 %v132
    %v418 = vunpack.c.l.b16 %v133
    %v419 = vunpack.c.l.b16 %v134
    %v420 = vunpack.c.l.b16 %v135
    %v421 = vunpack.c.l.b16 %v136
    %v422 = vunpack.c.l.b16 %v137
    %v423 = vunpack.c.l.b16 %v138
    %v424 = vunpack.c.l.b16 %v139
    %v425 = vunpack.c.l.b16 %v140
    %v426 = vunpack.c.l.b16 %v141
    %v427 = vunpack.c.l.b16 %v142
    %v428 = vunpack.c.l.b16 %v143
    %v429 = vunpack.c.l.b16 %v144
    %v430 = vunpack.c.l.b16 %v145
    %v431 = vunpack.c.l.b16 %v146
    %v432 = vunpack.c.l.b16 %v147
    %v433 = vunpack.c.l.b16 %v148
    %v434 = vunpack.c.l.b16 %v149
    %v435 = vunpack.c.l.b16 %v150
    %v436 = vunpack.c.l.b16 %v151
    %v437 = vunpack.c.l.b16 %v152
    %v438 = vunpack.c.l.b16 %v153
    %v439 = vunpack.c.l.b16 %v154
    %v440 = vunpack.c.l.b16 %v155
    %v441 = vunpack.c.l.b16 %v156
    %v442 = vunpack.c.l.b16 %v157
    %v443 = vunpack.c.l.b16 %v158
    %v444 = vunpack.c.l.b16 %v159
    %v445 = vunpack.c.l.b16 %v160
    %v446 = vunpack.c.l.b16 %v161
    %v447 = vunpack.c.l.b16 %v162
    %v448 = vunpack.c.l.b16 %v163
    %v449 = vunpack.c.l.b16 %v164
    %v450 = vunpack.c.l.b16 %v165
    %v451 = vunpack.c.l.b16 %v166
    %v452 = vunpack.c.l.b16 %v167
    %v453 = vunpack.c.l.b16 %v168
    %v454 = vunpack.c.l.b16 %v169
    %v455 = vunpack.c.l.b16 %v170
    %v456 = vunpack.c.l.b16 %v171
    %v457 = vunpack.c.l.b16 %v172
    %v458 = vunpack.c.l.b16 %v173
    %v459 = vunpack.c.l.b16 %v174
    %v460 = vunpack.c.l.b16 %v175
    %v461 = vunpack.c.l.b16 %v176
    %v462 = vunpack.c.l.b16 %v177
    %v463 = vunpack.c.l.b16 %v178
    %v464 = vunpack.c.l.b16 %v179
    %v465 = vunpack.c.l.b16 %v180
    %v466 = vunpack.c.l.b16 %v181
    %v467 = vunpack.c.l.b16 %v182
    %v468 = vunpack.c.l.b16 %v183
    %v469 = vunpack.c.l.b16 %v184
    %v470 = vunpack.c.l.b16 %v185
    %v471 = vunpack.c.l.b16 %v186
    %v472 = vunpack.c.l.b16 %v187
    %v473 = vunpack.c.l.b16 %v188
    %v474 = vunpack.c.l.b16 %v189
    %v475 = vunpack.c.l.b16 %v190
    %v476 = vunpack.c.l.b16 %v191
    %v477 = vunpack.c.l.b16 %v192
    %v478 = vunpack.c.l.b16 %v193
    %v479 = vunpack.c.l.b16 %v194
    %v480 = vunpack.c.l.b16 %v195
    %v481 = vunpack.c.l.b16 %v196
    %v482 = vunpack.c.l.b16 %v197
    %v483 = vunpack.c.l.b16 %v198
    %v484 = vunpack.c.l.b16 %v199
    %v485 = vunpack.c.l.b16 %v200
    %v486 = vunpack.c.l.b16 %v201
    %v487 = vunpack.c.l.b16 %v202
    %v488 = vunpack.c.l.b16 %v203
    %v489 = vunpack.c.l.b16 %v204
    %v490 = vunpack.c.l.b16 %v205
    %v491 = vunpack.c.l.b16 %v206
    %v492 = vunpack.c.l.b16 %v207
    %v493 = vunpack.c.l.b16 %v208
    %v494 = vunpack.c.l.b16 %v209
    %v495 = vunpack.c.l.b16 %v210
    %v496 = vunpack.c.l.b16 %v211
    %v497 = vunpack.c.l.b16 %v212
    %v498 = vunpack.c.l.b16 %v213
    %v499 = vunpack.c.l.b16 %v214
    %v500 = vunpack.c.l.b16 %v215
    %v501 = vunpack.c.l.b16 %v216
    %v502 = vunpack.c.l.b16 %v217
    %v503 = vunpack.c.l.b16 %v218
    %v504 = vunpack.c.l.b16 %v219
    %v505 = vunpack.c.l.b16 %v220
    %v506 = vunpack.c.l.b16 %v221
    %v507 = vunpack.c.l.b16 %v222
    %v508 = vunpack.c.l.b16 %v223
    %v509 = vunpack.c.l.b16 %v224
    %v510 = vunpack.c.l.b16 %v225
    %v511 = vunpack.c.l.b16 %v226
    %v512 = vunpack.c.l.b16 %v227
    %v513 = vunpack.c.l.b16 %v228
    %v514 = vunpack.c.l.b16 %v229
    %v515 = vunpack.c.l.b16 %v230
    %v516 = vunpack.c.l.b16 %v231
    %v517 = vunpack.c.l.b16 %v232
    %v518 = vpack.c.b16 %v391, %v390
    %v519 = vpack.c.b16 %v393, %v392
    %v520 = vpack.c.b16 %v395, %v394
    %v521 = vpack.c.b16 %v397, %v396
    %v522 = vpack.c.b16 %v399, %v398
    %v523 = vpack.c.b16 %v401, %v400
    %v524 = vpack.c.b16 %v403, %v402
    %v525 = vpack.c.b16 %v405, %v404
    %v526 = vpack.c.b16 %v407, %v406
    %v527 = vpack.c.b16 %v409, %v408
    %v528 = vpack.c.b16 %v411, %v410
    %v529 = vpack.c.b16 %v413, %v412
    %v530 = vpack.c.b16 %v415, %v414
    %v531 = vpack.c.b16 %v417, %v416
    %v532 = vpack.c.b16 %v419, %v418
    %v533 = vpack.c.b16 %v421, %v420
    %v534 = vpack.c.b16 %v423, %v422
    %v535 = vpack.c.b16 %v425, %v424
    %v536 = vpack.c.b16 %v427, %v426
    %v537 = vpack.c.b16 %v429, %v428
    %v538 = vpack.c.b16 %v431, %v430
    %v539 = vpack.c.b16 %v433, %v432
    %v540 = vpack.c.b16 %v435, %v434
    %v541 = vpack.c.b16 %v437, %v436
    %v542 = vpack.c.b16 %v439, %v438
    %v543 = vpack.c.b16 %v441, %v440
    %v544 = vpack.c.b16 %v443, %v442
    %v545 = vpack.c.b16 %v445, %v444
    %v546 = vpack.c.b16 %v447, %v446
    %v547 = vpack.c.b16 %v449, %v448
    %v548 = vpack.c.b16 %v451, %v450
    %v549 = vpack.c.b16 %v453, %v452
    %v550 = vpack.c.b16 %v455, %v454
    %v551 = vpack.c.b16 %v457, %v456
    %v552 = vpack.c.b16 %v459, %v458
    %v553 = vpack.c.b16 %v461, %v460
    %v554 = vpack.c.b16 %v463, %v462
    %v555 = vpack.c.b16 %v465, %v464
    %v556 = vpack.c.b16 %v467, %v466
    %v557 = vpack.c.b16 %v469, %v468
    %v558 = vpack.c.b16 %v471, %v470
    %v559 = vpack.c.b16 %v473, %v472
    %v560 = vpack.c.b16 %v475, %v474
    %v561 = vpack.c.b16 %v477, %v476
    %v562 = vpack.c.b16 %v479, %v478
    %v563 = vpack.c.b16 %v481, %v480
    %v564 = vpack.c.b16 %v483, %v482
    %v565 = vpack.c.b16 %v485, %v484
    %v566 = vpack.c.b16 %v487, %v486
    %v567 = vpack.c.b16 %v489, %v488
    %v568 = vpack.c.b16 %v491, %v490
    %v569 = vpack.c.b16 %v493, %v492
    %v570 = vpack.c.b16 %v495, %v494
    %v571 = vpack.c.b16 %v497, %v496
    %v572 = vpack.c.b16 %v499, %v498
    %v573 = vpack.c.b16 %v501, %v500
    %v574 = vpack.c.b16 %v503, %v502
    %v575 = vpack.c.b16 %v505, %v504
    %v576 = vpack.c.b16 %v507, %v506
    %v577 = vpack.c.b16 %v509, %v508
    %v578 = vpack.c.b16 %v511, %v510
    %v579 = vpack.c.b16 %v513, %v512
    %v580 = vpack.c.b16 %v515, %v514
    %v581 = vpack.c.b16 %v517, %v516
    %646 = vmatprep.subr.bf16.mxu0 0
    %647 = vmatpush1.bf16.msra.mxu0 %v518
    %648 = vmatprep.subr.bf16.mxu0 0
    %649 = vmatpush1.bf16.msra.mxu0 %v519
    %650 = vmatprep.subr.bf16.mxu0 0
    %651 = vmatpush1.bf16.msra.mxu0 %v520
    %652 = vmatprep.subr.bf16.mxu0 0
    %653 = vmatpush1.bf16.msra.mxu0 %v521
    %654 = vmatprep.subr.bf16.mxu0 0
    %655 = vmatpush1.bf16.msra.mxu0 %v522
    %656 = vmatprep.subr.bf16.mxu0 0
    %657 = vmatpush1.bf16.msra.mxu0 %v523
    %658 = vmatprep.subr.bf16.mxu0 0
    %659 = vmatpush1.bf16.msra.mxu0 %v524
    %660 = vmatprep.subr.bf16.mxu0 0
    %661 = vmatpush1.bf16.msra.mxu0 %v525
    %662 = vmatprep.subr.bf16.mxu0 0
    %663 = vmatpush1.bf16.msra.mxu0 %v526
    %664 = vmatprep.subr.bf16.mxu0 0
    %665 = vmatpush1.bf16.msra.mxu0 %v527
    %666 = vmatprep.subr.bf16.mxu0 0
    %667 = vmatpush1.bf16.msra.mxu0 %v528
    %668 = vmatprep.subr.bf16.mxu0 0
    %669 = vmatpush1.bf16.msra.mxu0 %v529
    %670 = vmatprep.subr.bf16.mxu0 0
    %671 = vmatpush1.bf16.msra.mxu0 %v530
    %672 = vmatprep.subr.bf16.mxu0 0
    %673 = vmatpush1.bf16.msra.mxu0 %v531
    %674 = vmatprep.subr.bf16.mxu0 0
    %675 = vmatpush1.bf16.msra.mxu0 %v532
    %676 = vmatprep.subr.bf16.mxu0 0
    %677 = vmatpush1.bf16.msra.mxu0 %v533
    %678 = vmatprep.mubr.bf16.mxu0 %v247
    %679 = vmatmul.mubr.bf16.gmra.mrb[0].mxu0 %v246
    %v680 = vpop.f32.mrb[0].mxu0
    %v681 = vadd.f32 %v233, %v680
    %v682 = vpop.f32.mrb[0].mxu0
    %v683 = vpop.f32.mrb[0].mxu0
    %v684 = vpop.f32.mrb[0].mxu0
    %685 = vdwg.mxu0
    %686 = vmatprep.subr.bf16.mxu0 0
    %687 = vmatpush1.bf16.msra.mxu0 %v534
    %688 = vmatprep.subr.bf16.mxu0 0
    %689 = vmatpush1.bf16.msra.mxu0 %v535
    %690 = vmatprep.subr.bf16.mxu0 0
    %691 = vmatpush1.bf16.msra.mxu0 %v536
    %692 = vmatprep.subr.bf16.mxu0 0
    %693 = vmatpush1.bf16.msra.mxu0 %v537
    %694 = vmatprep.subr.bf16.mxu0 0
    %695 = vmatpush1.bf16.msra.mxu0 %v538
    %696 = vmatprep.subr.bf16.mxu0 0
    %697 = vmatpush1.bf16.msra.mxu0 %v539
    %698 = vmatprep.subr.bf16.mxu0 0
    %699 = vmatpush1.bf16.msra.mxu0 %v540
    %700 = vmatprep.subr.bf16.mxu0 0
    %701 = vmatpush1.bf16.msra.mxu0 %v541
    %702 = vmatprep.subr.bf16.mxu0 0
    %703 = vmatpush1.bf16.msra.mxu0 %v542
    %704 = vmatprep.subr.bf16.mxu0 0
    %705 = vmatpush1.bf16.msra.mxu0 %v543
    %706 = vmatprep.subr.bf16.mxu0 0
    %707 = vmatpush1.bf16.msra.mxu0 %v544
    %708 = vmatprep.subr.bf16.mxu0 0
    %709 = vmatpush1.bf16.msra.mxu0 %v545
    %710 = vmatprep.subr.bf16.mxu0 0
    %711 = vmatpush1.bf16.msra.mxu0 %v546
    %712 = vmatprep.subr.bf16.mxu0 0
    %713 = vmatpush1.bf16.msra.mxu0 %v547
    %714 = vmatprep.subr.bf16.mxu0 0
    %715 = vmatpush1.bf16.msra.mxu0 %v548
    %716 = vmatprep.subr.bf16.mxu0 0
    %717 = vmatpush1.bf16.msra.mxu0 %v549
    %718 = vmatprep.mubr.bf16.mxu0 %v249
    %719 = vmatmul.mubr.bf16.gmra.mrb[0].mxu0 %v248
    %v720 = vpop.f32.mrb[0].mxu0
    %v721 = vadd.f32 %v681, %v720
    %v722 = vpop.f32.mrb[0].mxu0
    %v723 = vpop.f32.mrb[0].mxu0
    %v724 = vpop.f32.mrb[0].mxu0
    %725 = vdwg.mxu0
    %726 = vmatprep.subr.bf16.mxu0 0
    %727 = vmatpush1.bf16.msra.mxu0 %v550
    %728 = vmatprep.subr.bf16.mxu0 0
    %729 = vmatpush1.bf16.msra.mxu0 %v551
    %730 = vmatprep.subr.bf16.mxu0 0
    %731 = vmatpush1.bf16.msra.mxu0 %v552
    %732 = vmatprep.subr.bf16.mxu0 0
    %733 = vmatpush1.bf16.msra.mxu0 %v553
    %734 = vmatprep.subr.bf16.mxu0 0
    %735 = vmatpush1.bf16.msra.mxu0 %v554
    %736 = vmatprep.subr.bf16.mxu0 0
    %737 = vmatpush1.bf16.msra.mxu0 %v555
    %738 = vmatprep.subr.bf16.mxu0 0
    %739 = vmatpush1.bf16.msra.mxu0 %v556
    %740 = vmatprep.subr.bf16.mxu0 0
    %741 = vmatpush1.bf16.msra.mxu0 %v557
    %742 = vmatprep.subr.bf16.mxu0 0
    %743 = vmatpush1.bf16.msra.mxu0 %v558
    %744 = vmatprep.subr.bf16.mxu0 0
    %745 = vmatpush1.bf16.msra.mxu0 %v559
    %746 = vmatprep.subr.bf16.mxu0 0
    %747 = vmatpush1.bf16.msra.mxu0 %v560
    %748 = vmatprep.subr.bf16.mxu0 0
    %749 = vmatpush1.bf16.msra.mxu0 %v561
    %750 = vmatprep.subr.bf16.mxu0 0
    %751 = vmatpush1.bf16.msra.mxu0 %v562
    %752 = vmatprep.subr.bf16.mxu0 0
    %753 = vmatpush1.bf16.msra.mxu0 %v563
    %754 = vmatprep.subr.bf16.mxu0 0
    %755 = vmatpush1.bf16.msra.mxu0 %v564
    %756 = vmatprep.subr.bf16.mxu0 0
    %757 = vmatpush1.bf16.msra.mxu0 %v565
    %758 = vmatprep.mubr.bf16.mxu0 %v251
    %759 = vmatmul.mubr.bf16.gmra.mrb[0].mxu0 %v250
    %v760 = vpop.f32.mrb[0].mxu0
    %v761 = vadd.f32 %v721, %v760
    %v762 = vpop.f32.mrb[0].mxu0
    %v763 = vpop.f32.mrb[0].mxu0
    %v764 = vpop.f32.mrb[0].mxu0
    %765 = vdwg.mxu0
    %766 = vmatprep.subr.bf16.mxu0 0
    %767 = vmatpush1.bf16.msra.mxu0 %v566
    %768 = vmatprep.subr.bf16.mxu0 0
    %769 = vmatpush1.bf16.msra.mxu0 %v567
    %770 = vmatprep.subr.bf16.mxu0 0
    %771 = vmatpush1.bf16.msra.mxu0 %v568
    %772 = vmatprep.subr.bf16.mxu0 0
    %773 = vmatpush1.bf16.msra.mxu0 %v569
    %774 = vmatprep.subr.bf16.mxu0 0
    %775 = vmatpush1.bf16.msra.mxu0 %v570
    %776 = vmatprep.subr.bf16.mxu0 0
    %777 = vmatpush1.bf16.msra.mxu0 %v571
    %778 = vmatprep.subr.bf16.mxu0 0
    %779 = vmatpush1.bf16.msra.mxu0 %v572
    %780 = vmatprep.subr.bf16.mxu0 0
    %781 = vmatpush1.bf16.msra.mxu0 %v573
    %782 = vmatprep.subr.bf16.mxu0 0
    %783 = vmatpush1.bf16.msra.mxu0 %v574
    %784 = vmatprep.subr.bf16.mxu0 0
    %785 = vmatpush1.bf16.msra.mxu0 %v575
    %786 = vmatprep.subr.bf16.mxu0 0
    %787 = vmatpush1.bf16.msra.mxu0 %v576
    %788 = vmatprep.subr.bf16.mxu0 0
    %789 = vmatpush1.bf16.msra.mxu0 %v577
    %790 = vmatprep.subr.bf16.mxu0 0
    %791 = vmatpush1.bf16.msra.mxu0 %v578
    %792 = vmatprep.subr.bf16.mxu0 0
    %793 = vmatpush1.bf16.msra.mxu0 %v579
    %794 = vmatprep.subr.bf16.mxu0 0
    %795 = vmatpush1.bf16.msra.mxu0 %v580
    %796 = vmatprep.subr.bf16.mxu0 0
    %797 = vmatpush1.bf16.msra.mxu0 %v581
    %798 = vmatprep.mubr.bf16.mxu0 %v253
    %799 = vmatmul.mubr.bf16.gmra.mrb[0].mxu0 %v252
    %v800 = vpop.f32.mrb[0].mxu0
    %v801 = vadd.f32 %v761, %v800
    %v802 = vpop.f32.mrb[0].mxu0
    %v803 = vpop.f32.mrb[0].mxu0
    %v804 = vpop.f32.mrb[0].mxu0
    %805 = vdwg.mxu0
    %v806 = vmax.f32 %v801, 0.0
    %v807 = vld [vmem:[#allocation5] sm:$0xf]
    %v808 = vld [vmem:[#allocation5 + $0x4] sm:$0xf]
    %v809 = vld [vmem:[#allocation5 + $0x8] sm:$0xf]
    %v810 = vld [vmem:[#allocation5 + $0xc] sm:$0xf]
    %v811 = vld [vmem:[#allocation5 + $0x10] sm:$0xf]
    %v812 = vld [vmem:[#allocation5 + $0x14] sm:$0xf]
    %v813 = vld [vmem:[#allocation5 + $0x18] sm:$0xf]
    %v814 = vld [vmem:[#allocation5 + $0x1c] sm:$0xf]
    %v815 = vld [vmem:[#allocation5 + $0x20] sm:$0xf]
    %v816 = vld [vmem:[#allocation5 + $0x24] sm:$0xf]
    %v817 = vld [vmem:[#allocation5 + $0x28] sm:$0xf]
    %v818 = vld [vmem:[#allocation5 + $0x2c] sm:$0xf]
    %v819 = vld [vmem:[#allocation5 + $0x30] sm:$0xf]
    %v820 = vld [vmem:[#allocation5 + $0x34] sm:$0xf]
    %v821 = vld [vmem:[#allocation5 + $0x38] sm:$0xf]
    %v822 = vld [vmem:[#allocation5 + $0x3c] sm:$0xf]
    %v823 = vpack.c.bf16 %v806, %v806
    %v824 = vld [vmem:[#allocation10 + $0x1] ss:$0 sm:$0xff]
    %v841 = vunpack.c.l.b16 %v807
    %v842 = vunpack.c.l.b16 %v808
    %v843 = vunpack.c.l.b16 %v809
    %v844 = vunpack.c.l.b16 %v810
    %v845 = vunpack.c.l.b16 %v811
    %v846 = vunpack.c.l.b16 %v812
    %v847 = vunpack.c.l.b16 %v813
    %v848 = vunpack.c.l.b16 %v814
    %v849 = vunpack.c.l.b16 %v815
    %v850 = vunpack.c.l.b16 %v816
    %v851 = vunpack.c.l.b16 %v817
    %v852 = vunpack.c.l.b16 %v818
    %v853 = vunpack.c.l.b16 %v819
    %v854 = vunpack.c.l.b16 %v820
    %v855 = vunpack.c.l.b16 %v821
    %v856 = vunpack.c.l.b16 %v822
    %v857 = vpack.c.b16 %v842, %v841
    %v858 = vpack.c.b16 %v844, %v843
    %v859 = vpack.c.b16 %v846, %v845
    %v860 = vpack.c.b16 %v848, %v847
    %v861 = vpack.c.b16 %v850, %v849
    %v862 = vpack.c.b16 %v852, %v851
    %v863 = vpack.c.b16 %v854, %v853
    %v864 = vpack.c.b16 %v856, %v855
    %873 = vmatprep.subr.bf16.mxu0 0
    %874 = vmatpush1.bf16.msra.mxu0 %v857
    %875 = vmatprep.subr.bf16.mxu0 0
    %876 = vmatpush1.bf16.msra.mxu0 %v858
    %877 = vmatprep.subr.bf16.mxu0 0
    %878 = vmatpush1.bf16.msra.mxu0 %v859
    %879 = vmatprep.subr.bf16.mxu0 0
    %880 = vmatpush1.bf16.msra.mxu0 %v860
    %881 = vmatprep.subr.bf16.mxu0 0
    %882 = vmatpush1.bf16.msra.mxu0 %v861
    %883 = vmatprep.subr.bf16.mxu0 0
    %884 = vmatpush1.bf16.msra.mxu0 %v862
    %885 = vmatprep.subr.bf16.mxu0 0
    %886 = vmatpush1.bf16.msra.mxu0 %v863
    %887 = vmatprep.subr.bf16.mxu0 0
    %888 = vmatpush1.bf16.msra.mxu0 %v864
    %889 = vmatprep.subr.bf16.mxu0 0
    %890 = vmatpush1.bf16.msra.mxu0 0
    %891 = vmatprep.subr.bf16.mxu0 0
    %892 = vmatpush1.bf16.msra.mxu0 0
    %893 = vmatprep.subr.bf16.mxu0 0
    %894 = vmatpush1.bf16.msra.mxu0 0
    %895 = vmatprep.subr.bf16.mxu0 0
    %896 = vmatpush1.bf16.msra.mxu0 0
    %897 = vmatprep.subr.bf16.mxu0 0
    %898 = vmatpush1.bf16.msra.mxu0 0
    %899 = vmatprep.subr.bf16.mxu0 0
    %900 = vmatpush1.bf16.msra.mxu0 0
    %901 = vmatprep.subr.bf16.mxu0 0
    %902 = vmatpush1.bf16.msra.mxu0 0
    %903 = vmatprep.subr.bf16.mxu0 0
    %904 = vmatpush1.bf16.msra.mxu0 0
    %905 = vmatprep.mubr.bf16.mxu0 0
    %906 = vmatmul.mubr.bf16.gmra.mrb[0].mxu0 %v823
    %v907 = vpop.f32.mrb[0].mxu0
    %v908 = vadd.f32 %v824, %v907
    %v909 = vpop.f32.mrb[0].mxu0
    %v910 = vpop.f32.mrb[0].mxu0
    %v911 = vpop.f32.mrb[0].mxu0
    %912 = vdwg.mxu0
    %v913 = vmax.f32 %v908, 0.0
    %s914 = scalar_lea.vmem [#allocation5], 64
    %v915 = vld [vmem:[%s914] sm:$0xf]
    %v916 = vld [vmem:[%s914 + $0x4] sm:$0xf]
    %v917 = vld [vmem:[%s914 + $0x8] sm:$0xf]
    %v918 = vld [vmem:[%s914 + $0xc] sm:$0xf]
    %v919 = vld [vmem:[%s914 + $0x10] sm:$0xf]
    %v920 = vld [vmem:[%s914 + $0x14] sm:$0xf]
    %v921 = vld [vmem:[%s914 + $0x18] sm:$0xf]
    %v922 = vld [vmem:[%s914 + $0x1c] sm:$0xf]
    %v923 = vld [vmem:[%s914 + $0x20] sm:$0xf]
    %v924 = vld [vmem:[%s914 + $0x24] sm:$0xf]
    %v925 = vld [vmem:[%s914 + $0x28] sm:$0xf]
    %v926 = vld [vmem:[%s914 + $0x2c] sm:$0xf]
    %v927 = vld [vmem:[%s914 + $0x30] sm:$0xf]
    %v928 = vld [vmem:[%s914 + $0x34] sm:$0xf]
    %v929 = vld [vmem:[%s914 + $0x38] sm:$0xf]
    %v930 = vld [vmem:[%s914 + $0x3c] sm:$0xf]
    %v931 = vpack.c.bf16 %v913, %v913
    %v932 = vld [vmem:[#allocation10 + $0x2] ss:$0 sm:$0xff]
    %v949 = vunpack.c.l.b16 %v915
    %v950 = vunpack.c.l.b16 %v916
    %v951 = vunpack.c.l.b16 %v917
    %v952 = vunpack.c.l.b16 %v918
    %v953 = vunpack.c.l.b16 %v919
    %v954 = vunpack.c.l.b16 %v920
    %v955 = vunpack.c.l.b16 %v921
    %v956 = vunpack.c.l.b16 %v922
    %v957 = vunpack.c.l.b16 %v923
    %v958 = vunpack.c.l.b16 %v924
    %v959 = vunpack.c.l.b16 %v925
    %v960 = vunpack.c.l.b16 %v926
    %v961 = vunpack.c.l.b16 %v927
    %v962 = vunpack.c.l.b16 %v928
    %v963 = vunpack.c.l.b16 %v929
    %v964 = vunpack.c.l.b16 %v930
    %v965 = vpack.c.b16 %v950, %v949
    %v966 = vpack.c.b16 %v952, %v951
    %v967 = vpack.c.b16 %v954, %v953
    %v968 = vpack.c.b16 %v956, %v955
    %v969 = vpack.c.b16 %v958, %v957
    %v970 = vpack.c.b16 %v960, %v959
    %v971 = vpack.c.b16 %v962, %v961
    %v972 = vpack.c.b16 %v964, %v963
    %981 = vmatprep.subr.bf16.mxu0 0
    %982 = vmatpush1.bf16.msra.mxu0 %v965
    %983 = vmatprep.subr.bf16.mxu0 0
    %984 = vmatpush1.bf16.msra.mxu0 %v966
    %985 = vmatprep.subr.bf16.mxu0 0
    %986 = vmatpush1.bf16.msra.mxu0 %v967
    %987 = vmatprep.subr.bf16.mxu0 0
    %988 = vmatpush1.bf16.msra.mxu0 %v968
    %989 = vmatprep.subr.bf16.mxu0 0
    %990 = vmatpush1.bf16.msra.mxu0 %v969
    %991 = vmatprep.subr.bf16.mxu0 0
    %992 = vmatpush1.bf16.msra.mxu0 %v970
    %993 = vmatprep.subr.bf16.mxu0 0
    %994 = vmatpush1.bf16.msra.mxu0 %v971
    %995 = vmatprep.subr.bf16.mxu0 0
    %996 = vmatpush1.bf16.msra.mxu0 %v972
    %997 = vmatprep.subr.bf16.mxu0 0
    %998 = vmatpush1.bf16.msra.mxu0 0
    %999 = vmatprep.subr.bf16.mxu0 0
    %1000 = vmatpush1.bf16.msra.mxu0 0
    %1001 = vmatprep.subr.bf16.mxu0 0
    %1002 = vmatpush1.bf16.msra.mxu0 0
    %1003 = vmatprep.subr.bf16.mxu0 0
    %1004 = vmatpush1.bf16.msra.mxu0 0
    %1005 = vmatprep.subr.bf16.mxu0 0
    %1006 = vmatpush1.bf16.msra.mxu0 0
    %1007 = vmatprep.subr.bf16.mxu0 0
    %1008 = vmatpush1.bf16.msra.mxu0 0
    %1009 = vmatprep.subr.bf16.mxu0 0
    %1010 = vmatpush1.bf16.msra.mxu0 0
    %1011 = vmatprep.subr.bf16.mxu0 0
    %1012 = vmatpush1.bf16.msra.mxu0 0
    %1013 = vmatprep.mubr.bf16.mxu0 0
    %1014 = vmatmul.mubr.bf16.gmra.mrb[0].mxu0 %v931
    %v1015 = vpop.f32.mrb[0].mxu0
    %v1016 = vadd.f32 %v932, %v1015
    %v1017 = vpop.f32.mrb[0].mxu0
    %v1018 = vpop.f32.mrb[0].mxu0
    %v1019 = vpop.f32.mrb[0].mxu0
    %1020 = vdwg.mxu0
    %v1021 = vmax.f32 %v1016, 0.0
    %s1022 = scalar_lea.vmem [#allocation5], 128
    %v1023 = vld [vmem:[%s1022] sm:$0xf]
    %v1024 = vld [vmem:[%s1022 + $0x4] sm:$0xf]
    %v1025 = vld [vmem:[%s1022 + $0x8] sm:$0xf]
    %v1026 = vld [vmem:[%s1022 + $0xc] sm:$0xf]
    %v1027 = vld [vmem:[%s1022 + $0x10] sm:$0xf]
    %v1028 = vld [vmem:[%s1022 + $0x14] sm:$0xf]
    %v1029 = vld [vmem:[%s1022 + $0x18] sm:$0xf]
    %v1030 = vld [vmem:[%s1022 + $0x1c] sm:$0xf]
    %v1031 = vld [vmem:[%s1022 + $0x20] sm:$0xf]
    %v1032 = vld [vmem:[%s1022 + $0x24] sm:$0xf]
    %v1033 = vld [vmem:[%s1022 + $0x28] sm:$0xf]
    %v1034 = vld [vmem:[%s1022 + $0x2c] sm:$0xf]
    %v1035 = vld [vmem:[%s1022 + $0x30] sm:$0xf]
    %v1036 = vld [vmem:[%s1022 + $0x34] sm:$0xf]
    %v1037 = vld [vmem:[%s1022 + $0x38] sm:$0xf]
    %v1038 = vld [vmem:[%s1022 + $0x3c] sm:$0xf]
    %v1039 = vpack.c.bf16 %v1021, %v1021
    %v1040 = vld [vmem:[#allocation10 + $0x3] ss:$0 sm:$0xff]
    %v1057 = vunpack.c.l.b16 %v1023
    %v1058 = vunpack.c.l.b16 %v1024
    %v1059 = vunpack.c.l.b16 %v1025
    %v1060 = vunpack.c.l.b16 %v1026
    %v1061 = vunpack.c.l.b16 %v1027
    %v1062 = vunpack.c.l.b16 %v1028
    %v1063 = vunpack.c.l.b16 %v1029
    %v1064 = vunpack.c.l.b16 %v1030
    %v1065 = vunpack.c.l.b16 %v1031
    %v1066 = vunpack.c.l.b16 %v1032
    %v1067 = vunpack.c.l.b16 %v1033
    %v1068 = vunpack.c.l.b16 %v1034
    %v1069 = vunpack.c.l.b16 %v1035
    %v1070 = vunpack.c.l.b16 %v1036
    %v1071 = vunpack.c.l.b16 %v1037
    %v1072 = vunpack.c.l.b16 %v1038
    %v1073 = vpack.c.b16 %v1058, %v1057
    %v1074 = vpack.c.b16 %v1060, %v1059
    %v1075 = vpack.c.b16 %v1062, %v1061
    %v1076 = vpack.c.b16 %v1064, %v1063
    %v1077 = vpack.c.b16 %v1066, %v1065
    %v1078 = vpack.c.b16 %v1068, %v1067
    %v1079 = vpack.c.b16 %v1070, %v1069
    %v1080 = vpack.c.b16 %v1072, %v1071
    %1089 = vmatprep.subr.bf16.mxu0 0
    %1090 = vmatpush1.bf16.msra.mxu0 %v1073
    %1091 = vmatprep.subr.bf16.mxu0 0
    %1092 = vmatpush1.bf16.msra.mxu0 %v1074
    %1093 = vmatprep.subr.bf16.mxu0 0
    %1094 = vmatpush1.bf16.msra.mxu0 %v1075
    %1095 = vmatprep.subr.bf16.mxu0 0
    %1096 = vmatpush1.bf16.msra.mxu0 %v1076
    %1097 = vmatprep.subr.bf16.mxu0 0
    %1098 = vmatpush1.bf16.msra.mxu0 %v1077
    %1099 = vmatprep.subr.bf16.mxu0 0
    %1100 = vmatpush1.bf16.msra.mxu0 %v1078
    %1101 = vmatprep.subr.bf16.mxu0 0
    %1102 = vmatpush1.bf16.msra.mxu0 %v1079
    %1103 = vmatprep.subr.bf16.mxu0 0
    %1104 = vmatpush1.bf16.msra.mxu0 %v1080
    %1105 = vmatprep.subr.bf16.mxu0 0
    %1106 = vmatpush1.bf16.msra.mxu0 0
    %1107 = vmatprep.subr.bf16.mxu0 0
    %1108 = vmatpush1.bf16.msra.mxu0 0
    %1109 = vmatprep.subr.bf16.mxu0 0
    %1110 = vmatpush1.bf16.msra.mxu0 0
    %1111 = vmatprep.subr.bf16.mxu0 0
    %1112 = vmatpush1.bf16.msra.mxu0 0
    %1113 = vmatprep.subr.bf16.mxu0 0
    %1114 = vmatpush1.bf16.msra.mxu0 0
    %1115 = vmatprep.subr.bf16.mxu0 0
    %1116 = vmatpush1.bf16.msra.mxu0 0
    %1117 = vmatprep.subr.bf16.mxu0 0
    %1118 = vmatpush1.bf16.msra.mxu0 0
    %1119 = vmatprep.subr.bf16.mxu0 0
    %1120 = vmatpush1.bf16.msra.mxu0 0
    %1121 = vmatprep.mubr.bf16.mxu0 0
    %1122 = vmatmul.mubr.bf16.gmra.mrb[0].mxu0 %v1039
    %v1123 = vpop.f32.mrb[0].mxu0
    %v1124 = vadd.f32 %v1040, %v1123
    %v1125 = vpop.f32.mrb[0].mxu0
    %v1126 = vpop.f32.mrb[0].mxu0
    %v1127 = vpop.f32.mrb[0].mxu0
    %1128 = vdwg.mxu0
    %v1129 = vmax.f32 %v1124, 0.0
    %v1130 = vld [vmem:[%s4] sm:$0xff]
    %v1131 = vld [vmem:[%s4 + $0x8] sm:$0xff]
    %v1132 = vld [vmem:[%s4 + $0x10] sm:$0xff]
    %v1133 = vld [vmem:[%s4 + $0x18] sm:$0xff]
    %v1134 = vld [vmem:[%s4 + $0x20] sm:$0xff]
    %v1135 = vld [vmem:[%s4 + $0x28] sm:$0xff]
    %v1136 = vld [vmem:[%s4 + $0x30] sm:$0xff]
    %v1137 = vld [vmem:[%s4 + $0x38] sm:$0xff]
    %v1138 = vld [vmem:[%s4 + $0x40] sm:$0xff]
    %v1139 = vld [vmem:[%s4 + $0x48] sm:$0xff]
    %v1140 = vld [vmem:[%s4 + $0x50] sm:$0xff]
    %v1141 = vld [vmem:[%s4 + $0x58] sm:$0xff]
    %v1142 = vld [vmem:[%s4 + $0x60] sm:$0xff]
    %v1143 = vld [vmem:[%s4 + $0x68] sm:$0xff]
    %v1144 = vld [vmem:[%s4 + $0x70] sm:$0xff]
    %v1145 = vld [vmem:[%s4 + $0x78] sm:$0xff]
    %v1146 = vpack.c.bf16 %v1129, %v1129
    %s1147 = scalar_lea.vmem [#allocation10], 7
    %v1148 = vld [vmem:[%s1147] ss:$8 sm:$0x3]
    %v1150 = vlaneseq
    %v1151 = vshrl.u32 %v1150, 7
    %v1152 = vsub.s32 0, %v1151
    %v1153 = vrot.slane %v1148, %v1152
    %v1154 = vlaneseq
    %v1155 = vshrl.u32 %v1154, 7
    %v1156 = vsub.s32 1, %v1155
    %v1157 = vrot.slane %v1148, %v1156
    %v1176 = vunpack.c.l.b16 %v1130
    %v1177 = vunpack.c.h.b16 %v1130
    %v1178 = vunpack.c.l.b16 %v1131
    %v1179 = vunpack.c.h.b16 %v1131
    %v1180 = vunpack.c.l.b16 %v1132
    %v1181 = vunpack.c.h.b16 %v1132
    %v1182 = vunpack.c.l.b16 %v1133
    %v1183 = vunpack.c.h.b16 %v1133
    %v1184 = vunpack.c.l.b16 %v1134
    %v1185 = vunpack.c.h.b16 %v1134
    %v1186 = vunpack.c.l.b16 %v1135
    %v1187 = vunpack.c.h.b16 %v1135
    %v1188 = vunpack.c.l.b16 %v1136
    %v1189 = vunpack.c.h.b16 %v1136
    %v1190 = vunpack.c.l.b16 %v1137
    %v1191 = vunpack.c.h.b16 %v1137
    %v1192 = vunpack.c.l.b16 %v1138
    %v1193 = vunpack.c.h.b16 %v1138
    %v1194 = vunpack.c.l.b16 %v1139
    %v1195 = vunpack.c.h.b16 %v1139
    %v1196 = vunpack.c.l.b16 %v1140
    %v1197 = vunpack.c.h.b16 %v1140
    %v1198 = vunpack.c.l.b16 %v1141
    %v1199 = vunpack.c.h.b16 %v1141
    %v1200 = vunpack.c.l.b16 %v1142
    %v1201 = vunpack.c.h.b16 %v1142
    %v1202 = vunpack.c.l.b16 %v1143
    %v1203 = vunpack.c.h.b16 %v1143
    %v1204 = vunpack.c.l.b16 %v1144
    %v1205 = vunpack.c.h.b16 %v1144
    %v1206 = vunpack.c.l.b16 %v1145
    %v1207 = vunpack.c.h.b16 %v1145
    %v1208 = vpack.c.b16 %v1178, %v1176
    %v1209 = vpack.c.b16 %v1179, %v1177
    %v1210 = vpack.c.b16 %v1182, %v1180
    %v1211 = vpack.c.b16 %v1183, %v1181
    %v1212 = vpack.c.b16 %v1186, %v1184
    %v1213 = vpack.c.b16 %v1187, %v1185
    %v1214 = vpack.c.b16 %v1190, %v1188
    %v1215 = vpack.c.b16 %v1191, %v1189
    %v1216 = vpack.c.b16 %v1194, %v1192
    %v1217 = vpack.c.b16 %v1195, %v1193
    %v1218 = vpack.c.b16 %v1198, %v1196
    %v1219 = vpack.c.b16 %v1199, %v1197
    %v1220 = vpack.c.b16 %v1202, %v1200
    %v1221 = vpack.c.b16 %v1203, %v1201
    %v1222 = vpack.c.b16 %v1206, %v1204
    %v1223 = vpack.c.b16 %v1207, %v1205
    %1240 = vmatprep.subr.bf16.mxu0 %v1209
    %1241 = vmatpush1.bf16.msra.mxu0 %v1208
    %1242 = vmatprep.subr.bf16.mxu0 %v1211
    %1243 = vmatpush1.bf16.msra.mxu0 %v1210
    %1244 = vmatprep.subr.bf16.mxu0 %v1213
    %1245 = vmatpush1.bf16.msra.mxu0 %v1212
    %1246 = vmatprep.subr.bf16.mxu0 %v1215
    %1247 = vmatpush1.bf16.msra.mxu0 %v1214
    %1248 = vmatprep.subr.bf16.mxu0 %v1217
    %1249 = vmatpush1.bf16.msra.mxu0 %v1216
    %1250 = vmatprep.subr.bf16.mxu0 %v1219
    %1251 = vmatpush1.bf16.msra.mxu0 %v1218
    %1252 = vmatprep.subr.bf16.mxu0 %v1221
    %1253 = vmatpush1.bf16.msra.mxu0 %v1220
    %1254 = vmatprep.subr.bf16.mxu0 %v1223
    %1255 = vmatpush1.bf16.msra.mxu0 %v1222
    %1256 = vmatprep.subr.bf16.mxu0 0
    %1257 = vmatpush1.bf16.msra.mxu0 0
    %1258 = vmatprep.subr.bf16.mxu0 0
    %1259 = vmatpush1.bf16.msra.mxu0 0
    %1260 = vmatprep.subr.bf16.mxu0 0
    %1261 = vmatpush1.bf16.msra.mxu0 0
    %1262 = vmatprep.subr.bf16.mxu0 0
    %1263 = vmatpush1.bf16.msra.mxu0 0
    %1264 = vmatprep.subr.bf16.mxu0 0
    %1265 = vmatpush1.bf16.msra.mxu0 0
    %1266 = vmatprep.subr.bf16.mxu0 0
    %1267 = vmatpush1.bf16.msra.mxu0 0
    %1268 = vmatprep.subr.bf16.mxu0 0
    %1269 = vmatpush1.bf16.msra.mxu0 0
    %1270 = vmatprep.subr.bf16.mxu0 0
    %1271 = vmatpush1.bf16.msra.mxu0 0
    %1272 = vmatprep.mubr.bf16.mxu0 0
    %1273 = vmatmul.mubr.bf16.gmra.mrb[0].mxu0 %v1146
    %v1274 = vpop.f32.mrb[0].mxu0
    %v1275 = vadd.f32 %v1153, %v1274
    %v1276 = vpop.f32.mrb[0].mxu0
    %v1277 = vadd.f32 %v1157, %v1276
    %v1278 = vpop.f32.mrb[0].mxu0
    %v1279 = vpop.f32.mrb[0].mxu0
    %1280 = vdwg.mxu0
    %v1281 = vmul.f32 %v1277, 0.5
    %v1282 = vmul.f32 %v1281, 1.442695
    %v1283 = vpow.pop %v1282
    %v1284 = vld [vmem:[%s1] sm:$0xff]
    %v1285 = vmul.f32 %v1283, %v1284
    %v1286 = vadd.f32 %v1275, %v1285
    %v1287 = vld [vmem:[#allocation7] sm:$0xf]
    %v1288 = vld [vmem:[#allocation7 + $0x4] sm:$0xf]
    %v1289 = vld [vmem:[#allocation7 + $0x8] sm:$0xf]
    %v1290 = vld [vmem:[#allocation7 + $0xc] sm:$0xf]
    %v1291 = vld [vmem:[#allocation7 + $0x10] sm:$0xf]
    %v1292 = vld [vmem:[#allocation7 + $0x14] sm:$0xf]
    %v1293 = vld [vmem:[#allocation7 + $0x18] sm:$0xf]
    %v1294 = vld [vmem:[#allocation7 + $0x1c] sm:$0xf]
    %v1295 = vld [vmem:[#allocation7 + $0x20] sm:$0xf]
    %v1296 = vld [vmem:[#allocation7 + $0x24] sm:$0xf]
    %v1297 = vld [vmem:[#allocation7 + $0x28] sm:$0xf]
    %v1298 = vld [vmem:[#allocation7 + $0x2c] sm:$0xf]
    %v1299 = vld [vmem:[#allocation7 + $0x30] sm:$0xf]
    %v1300 = vld [vmem:[#allocation7 + $0x34] sm:$0xf]
    %v1301 = vld [vmem:[#allocation7 + $0x38] sm:$0xf]
    %v1302 = vld [vmem:[#allocation7 + $0x3c] sm:$0xf]
    %v1303 = vpack.c.bf16 %v1286, %v1286
    %v1304 = vld [vmem:[#allocation10 + $0x40] ss:$0 sm:$0xff]
    %v1321 = vunpack.c.l.b16 %v1287
    %v1322 = vunpack.c.l.b16 %v1288
    %v1323 = vunpack.c.l.b16 %v1289
    %v1324 = vunpack.c.l.b16 %v1290
    %v1325 = vunpack.c.l.b16 %v1291
    %v1326 = vunpack.c.l.b16 %v1292
    %v1327 = vunpack.c.l.b16 %v1293
    %v1328 = vunpack.c.l.b16 %v1294
    %v1329 = vunpack.c.l.b16 %v1295
    %v1330 = vunpack.c.l.b16 %v1296
    %v1331 = vunpack.c.l.b16 %v1297
    %v1332 = vunpack.c.l.b16 %v1298
    %v1333 = vunpack.c.l.b16 %v1299
    %v1334 = vunpack.c.l.b16 %v1300
    %v1335 = vunpack.c.l.b16 %v1301
    %v1336 = vunpack.c.l.b16 %v1302
    %v1337 = vpack.c.b16 %v1322, %v1321
    %v1338 = vpack.c.b16 %v1324, %v1323
    %v1339 = vpack.c.b16 %v1326, %v1325
    %v1340 = vpack.c.b16 %v1328, %v1327
    %v1341 = vpack.c.b16 %v1330, %v1329
    %v1342 = vpack.c.b16 %v1332, %v1331
    %v1343 = vpack.c.b16 %v1334, %v1333
    %v1344 = vpack.c.b16 %v1336, %v1335
    %1353 = vmatprep.subr.bf16.mxu0 0
    %1354 = vmatpush1.bf16.msra.mxu0 %v1337
    %1355 = vmatprep.subr.bf16.mxu0 0
    %1356 = vmatpush1.bf16.msra.mxu0 %v1338
    %1357 = vmatprep.subr.bf16.mxu0 0
    %1358 = vmatpush1.bf16.msra.mxu0 %v1339
    %1359 = vmatprep.subr.bf16.mxu0 0
    %1360 = vmatpush1.bf16.msra.mxu0 %v1340
    %1361 = vmatprep.subr.bf16.mxu0 0
    %1362 = vmatpush1.bf16.msra.mxu0 %v1341
    %1363 = vmatprep.subr.bf16.mxu0 0
    %1364 = vmatpush1.bf16.msra.mxu0 %v1342
    %1365 = vmatprep.subr.bf16.mxu0 0
    %1366 = vmatpush1.bf16.msra.mxu0 %v1343
    %1367 = vmatprep.subr.bf16.mxu0 0
    %1368 = vmatpush1.bf16.msra.mxu0 %v1344
    %1369 = vmatprep.subr.bf16.mxu0 0
    %1370 = vmatpush1.bf16.msra.mxu0 0
    %1371 = vmatprep.subr.bf16.mxu0 0
    %1372 = vmatpush1.bf16.msra.mxu0 0
    %1373 = vmatprep.subr.bf16.mxu0 0
    %1374 = vmatpush1.bf16.msra.mxu0 0
    %1375 = vmatprep.subr.bf16.mxu0 0
    %1376 = vmatpush1.bf16.msra.mxu0 0
    %1377 = vmatprep.subr.bf16.mxu0 0
    %1378 = vmatpush1.bf16.msra.mxu0 0
    %1379 = vmatprep.subr.bf16.mxu0 0
    %1380 = vmatpush1.bf16.msra.mxu0 0
    %1381 = vmatprep.subr.bf16.mxu0 0
    %1382 = vmatpush1.bf16.msra.mxu0 0
    %1383 = vmatprep.subr.bf16.mxu0 0
    %1384 = vmatpush1.bf16.msra.mxu0 0
    %1385 = vmatprep.mubr.bf16.mxu0 0
    %1386 = vmatmul.mubr.bf16.gmra.mrb[0].mxu0 %v1303
    %v1387 = vpop.f32.mrb[0].mxu0
    %v1388 = vadd.f32 %v1304, %v1387
    %v1389 = vpop.f32.mrb[0].mxu0
    %v1390 = vpop.f32.mrb[0].mxu0
    %v1391 = vpop.f32.mrb[0].mxu0
    %1392 = vdwg.mxu0
    %s1393 = scalar_lea.vmem [#allocation5], 192
    %v1394 = vld [vmem:[%s1393] sm:$0xf]
    %v1395 = vld [vmem:[%s1393 + $0x4] sm:$0xf]
    %v1396 = vld [vmem:[%s1393 + $0x8] sm:$0xf]
    %v1397 = vld [vmem:[%s1393 + $0xc] sm:$0xf]
    %v1398 = vld [vmem:[%s1393 + $0x10] sm:$0xf]
    %v1399 = vld [vmem:[%s1393 + $0x14] sm:$0xf]
    %v1400 = vld [vmem:[%s1393 + $0x18] sm:$0xf]
    %v1401 = vld [vmem:[%s1393 + $0x1c] sm:$0xf]
    %v1402 = vld [vmem:[%s1393 + $0x20] sm:$0xf]
    %v1403 = vld [vmem:[%s1393 + $0x24] sm:$0xf]
    %v1404 = vld [vmem:[%s1393 + $0x28] sm:$0xf]
    %v1405 = vld [vmem:[%s1393 + $0x2c] sm:$0xf]
    %v1406 = vld [vmem:[%s1393 + $0x30] sm:$0xf]
    %v1407 = vld [vmem:[%s1393 + $0x34] sm:$0xf]
    %v1408 = vld [vmem:[%s1393 + $0x38] sm:$0xf]
    %v1409 = vld [vmem:[%s1393 + $0x3c] sm:$0xf]
    %v1410 = vpack.c.bf16 %v1388, %v1388
    %v1411 = vld [vmem:[#allocation10 + $0x4] ss:$0 sm:$0xff]
    %v1428 = vunpack.c.l.b16 %v1394
    %v1429 = vunpack.c.l.b16 %v1395
    %v1430 = vunpack.c.l.b16 %v1396
    %v1431 = vunpack.c.l.b16 %v1397
    %v1432 = vunpack.c.l.b16 %v1398
    %v1433 = vunpack.c.l.b16 %v1399
    %v1434 = vunpack.c.l.b16 %v1400
    %v1435 = vunpack.c.l.b16 %v1401
    %v1436 = vunpack.c.l.b16 %v1402
    %v1437 = vunpack.c.l.b16 %v1403
    %v1438 = vunpack.c.l.b16 %v1404
    %v1439 = vunpack.c.l.b16 %v1405
    %v1440 = vunpack.c.l.b16 %v1406
    %v1441 = vunpack.c.l.b16 %v1407
    %v1442 = vunpack.c.l.b16 %v1408
    %v1443 = vunpack.c.l.b16 %v1409
    %v1444 = vpack.c.b16 %v1429, %v1428
    %v1445 = vpack.c.b16 %v1431, %v1430
    %v1446 = vpack.c.b16 %v1433, %v1432
    %v1447 = vpack.c.b16 %v1435, %v1434
    %v1448 = vpack.c.b16 %v1437, %v1436
    %v1449 = vpack.c.b16 %v1439, %v1438
    %v1450 = vpack.c.b16 %v1441, %v1440
    %v1451 = vpack.c.b16 %v1443, %v1442
    %1460 = vmatprep.subr.bf16.mxu0 0
    %1461 = vmatpush1.bf16.msra.mxu0 %v1444
    %1462 = vmatprep.subr.bf16.mxu0 0
    %1463 = vmatpush1.bf16.msra.mxu0 %v1445
    %1464 = vmatprep.subr.bf16.mxu0 0
    %1465 = vmatpush1.bf16.msra.mxu0 %v1446
    %1466 = vmatprep.subr.bf16.mxu0 0
    %1467 = vmatpush1.bf16.msra.mxu0 %v1447
    %1468 = vmatprep.subr.bf16.mxu0 0
    %1469 = vmatpush1.bf16.msra.mxu0 %v1448
    %1470 = vmatprep.subr.bf16.mxu0 0
    %1471 = vmatpush1.bf16.msra.mxu0 %v1449
    %1472 = vmatprep.subr.bf16.mxu0 0
    %1473 = vmatpush1.bf16.msra.mxu0 %v1450
    %1474 = vmatprep.subr.bf16.mxu0 0
    %1475 = vmatpush1.bf16.msra.mxu0 %v1451
    %1476 = vmatprep.subr.bf16.mxu0 0
    %1477 = vmatpush1.bf16.msra.mxu0 0
    %1478 = vmatprep.subr.bf16.mxu0 0
    %1479 = vmatpush1.bf16.msra.mxu0 0
    %1480 = vmatprep.subr.bf16.mxu0 0
    %1481 = vmatpush1.bf16.msra.mxu0 0
    %1482 = vmatprep.subr.bf16.mxu0 0
    %1483 = vmatpush1.bf16.msra.mxu0 0
    %1484 = vmatprep.subr.bf16.mxu0 0
    %1485 = vmatpush1.bf16.msra.mxu0 0
    %1486 = vmatprep.subr.bf16.mxu0 0
    %1487 = vmatpush1.bf16.msra.mxu0 0
    %1488 = vmatprep.subr.bf16.mxu0 0
    %1489 = vmatpush1.bf16.msra.mxu0 0
    %1490 = vmatprep.subr.bf16.mxu0 0
    %1491 = vmatpush1.bf16.msra.mxu0 0
    %1492 = vmatprep.mubr.bf16.mxu0 0
    %1493 = vmatmul.mubr.bf16.gmra.mrb[0].mxu0 %v1410
    %v1494 = vpop.f32.mrb[0].mxu0
    %v1495 = vadd.f32 %v1411, %v1494
    %v1496 = vpop.f32.mrb[0].mxu0
    %v1497 = vpop.f32.mrb[0].mxu0
    %v1498 = vpop.f32.mrb[0].mxu0
    %1499 = vdwg.mxu0
    %v1500 = vmax.f32 %v1495, 0.0
    %s1501 = scalar_lea.vmem [#allocation5], 256
    %v1502 = vld [vmem:[%s1501] sm:$0xf]
    %v1503 = vld [vmem:[%s1501 + $0x4] sm:$0xf]
    %v1504 = vld [vmem:[%s1501 + $0x8] sm:$0xf]
    %v1505 = vld [vmem:[%s1501 + $0xc] sm:$0xf]
    %v1506 = vld [vmem:[%s1501 + $0x10] sm:$0xf]
    %v1507 = vld [vmem:[%s1501 + $0x14] sm:$0xf]
    %v1508 = vld [vmem:[%s1501 + $0x18] sm:$0xf]
    %v1509 = vld [vmem:[%s1501 + $0x1c] sm:$0xf]
    %v1510 = vld [vmem:[%s1501 + $0x20] sm:$0xf]
    %v1511 = vld [vmem:[%s1501 + $0x24] sm:$0xf]
    %v1512 = vld [vmem:[%s1501 + $0x28] sm:$0xf]
    %v1513 = vld [vmem:[%s1501 + $0x2c] sm:$0xf]
    %v1514 = vld [vmem:[%s1501 + $0x30] sm:$0xf]
    %v1515 = vld [vmem:[%s1501 + $0x34] sm:$0xf]
    %v1516 = vld [vmem:[%s1501 + $0x38] sm:$0xf]
    %v1517 = vld [vmem:[%s1501 + $0x3c] sm:$0xf]
    %v1518 = vpack.c.bf16 %v1500, %v1500
    %v1519 = vld [vmem:[#allocation10 + $0x5] ss:$0 sm:$0xff]
    %v1536 = vunpack.c.l.b16 %v1502
    %v1537 = vunpack.c.l.b16 %v1503
    %v1538 = vunpack.c.l.b16 %v1504
    %v1539 = vunpack.c.l.b16 %v1505
    %v1540 = vunpack.c.l.b16 %v1506
    %v1541 = vunpack.c.l.b16 %v1507
    %v1542 = vunpack.c.l.b16 %v1508
    %v1543 = vunpack.c.l.b16 %v1509
    %v1544 = vunpack.c.l.b16 %v1510
    %v1545 = vunpack.c.l.b16 %v1511
    %v1546 = vunpack.c.l.b16 %v1512
    %v1547 = vunpack.c.l.b16 %v1513
    %v1548 = vunpack.c.l.b16 %v1514
    %v1549 = vunpack.c.l.b16 %v1515
    %v1550 = vunpack.c.l.b16 %v1516
    %v1551 = vunpack.c.l.b16 %v1517
    %v1552 = vpack.c.b16 %v1537, %v1536
    %v1553 = vpack.c.b16 %v1539, %v1538
    %v1554 = vpack.c.b16 %v1541, %v1540
    %v1555 = vpack.c.b16 %v1543, %v1542
    %v1556 = vpack.c.b16 %v1545, %v1544
    %v1557 = vpack.c.b16 %v1547, %v1546
    %v1558 = vpack.c.b16 %v1549, %v1548
    %v1559 = vpack.c.b16 %v1551, %v1550
    %1568 = vmatprep.subr.bf16.mxu0 0
    %1569 = vmatpush1.bf16.msra.mxu0 %v1552
    %1570 = vmatprep.subr.bf16.mxu0 0
    %1571 = vmatpush1.bf16.msra.mxu0 %v1553
    %1572 = vmatprep.subr.bf16.mxu0 0
    %1573 = vmatpush1.bf16.msra.mxu0 %v1554
    %1574 = vmatprep.subr.bf16.mxu0 0
    %1575 = vmatpush1.bf16.msra.mxu0 %v1555
    %1576 = vmatprep.subr.bf16.mxu0 0
    %1577 = vmatpush1.bf16.msra.mxu0 %v1556
    %1578 = vmatprep.subr.bf16.mxu0 0
    %1579 = vmatpush1.bf16.msra.mxu0 %v1557
    %1580 = vmatprep.subr.bf16.mxu0 0
    %1581 = vmatpush1.bf16.msra.mxu0 %v1558
    %1582 = vmatprep.subr.bf16.mxu0 0
    %1583 = vmatpush1.bf16.msra.mxu0 %v1559
    %1584 = vmatprep.subr.bf16.mxu0 0
    %1585 = vmatpush1.bf16.msra.mxu0 0
    %1586 = vmatprep.subr.bf16.mxu0 0
    %1587 = vmatpush1.bf16.msra.mxu0 0
    %1588 = vmatprep.subr.bf16.mxu0 0
    %1589 = vmatpush1.bf16.msra.mxu0 0
    %1590 = vmatprep.subr.bf16.mxu0 0
    %1591 = vmatpush1.bf16.msra.mxu0 0
    %1592 = vmatprep.subr.bf16.mxu0 0
    %1593 = vmatpush1.bf16.msra.mxu0 0
    %1594 = vmatprep.subr.bf16.mxu0 0
    %1595 = vmatpush1.bf16.msra.mxu0 0
    %1596 = vmatprep.subr.bf16.mxu0 0
    %1597 = vmatpush1.bf16.msra.mxu0 0
    %1598 = vmatprep.subr.bf16.mxu0 0
    %1599 = vmatpush1.bf16.msra.mxu0 0
    %1600 = vmatprep.mubr.bf16.mxu0 0
    %1601 = vmatmul.mubr.bf16.gmra.mrb[0].mxu0 %v1518
    %v1602 = vpop.f32.mrb[0].mxu0
    %v1603 = vadd.f32 %v1519, %v1602
    %v1604 = vpop.f32.mrb[0].mxu0
    %v1605 = vpop.f32.mrb[0].mxu0
    %v1606 = vpop.f32.mrb[0].mxu0
    %1607 = vdwg.mxu0
    %v1608 = vmax.f32 %v1603, 0.0
    %s1609 = scalar_lea.vmem [#allocation5], 320
    %v1610 = vld [vmem:[%s1609] sm:$0xf]
    %v1611 = vld [vmem:[%s1609 + $0x4] sm:$0xf]
    %v1612 = vld [vmem:[%s1609 + $0x8] sm:$0xf]
    %v1613 = vld [vmem:[%s1609 + $0xc] sm:$0xf]
    %v1614 = vld [vmem:[%s1609 + $0x10] sm:$0xf]
    %v1615 = vld [vmem:[%s1609 + $0x14] sm:$0xf]
    %v1616 = vld [vmem:[%s1609 + $0x18] sm:$0xf]
    %v1617 = vld [vmem:[%s1609 + $0x1c] sm:$0xf]
    %v1618 = vld [vmem:[%s1609 + $0x20] sm:$0xf]
    %v1619 = vld [vmem:[%s1609 + $0x24] sm:$0xf]
    %v1620 = vld [vmem:[%s1609 + $0x28] sm:$0xf]
    %v1621 = vld [vmem:[%s1609 + $0x2c] sm:$0xf]
    %v1622 = vld [vmem:[%s1609 + $0x30] sm:$0xf]
    %v1623 = vld [vmem:[%s1609 + $0x34] sm:$0xf]
    %v1624 = vld [vmem:[%s1609 + $0x38] sm:$0xf]
    %v1625 = vld [vmem:[%s1609 + $0x3c] sm:$0xf]
    %v1626 = vpack.c.bf16 %v1608, %v1608
    %v1627 = vld [vmem:[#allocation10 + $0x6] ss:$0 sm:$0xff]
    %v1644 = vunpack.c.l.b16 %v1610
    %v1645 = vunpack.c.l.b16 %v1611
    %v1646 = vunpack.c.l.b16 %v1612
    %v1647 = vunpack.c.l.b16 %v1613
    %v1648 = vunpack.c.l.b16 %v1614
    %v1649 = vunpack.c.l.b16 %v1615
    %v1650 = vunpack.c.l.b16 %v1616
    %v1651 = vunpack.c.l.b16 %v1617
    %v1652 = vunpack.c.l.b16 %v1618
    %v1653 = vunpack.c.l.b16 %v1619
    %v1654 = vunpack.c.l.b16 %v1620
    %v1655 = vunpack.c.l.b16 %v1621
    %v1656 = vunpack.c.l.b16 %v1622
    %v1657 = vunpack.c.l.b16 %v1623
    %v1658 = vunpack.c.l.b16 %v1624
    %v1659 = vunpack.c.l.b16 %v1625
    %v1660 = vpack.c.b16 %v1645, %v1644
    %v1661 = vpack.c.b16 %v1647, %v1646
    %v1662 = vpack.c.b16 %v1649, %v1648
    %v1663 = vpack.c.b16 %v1651, %v1650
    %v1664 = vpack.c.b16 %v1653, %v1652
    %v1665 = vpack.c.b16 %v1655, %v1654
    %v1666 = vpack.c.b16 %v1657, %v1656
    %v1667 = vpack.c.b16 %v1659, %v1658
    %1676 = vmatprep.subr.bf16.mxu0 0
    %1677 = vmatpush1.bf16.msra.mxu0 %v1660
    %1678 = vmatprep.subr.bf16.mxu0 0
    %1679 = vmatpush1.bf16.msra.mxu0 %v1661
    %1680 = vmatprep.subr.bf16.mxu0 0
    %1681 = vmatpush1.bf16.msra.mxu0 %v1662
    %1682 = vmatprep.subr.bf16.mxu0 0
    %1683 = vmatpush1.bf16.msra.mxu0 %v1663
    %1684 = vmatprep.subr.bf16.mxu0 0
    %1685 = vmatpush1.bf16.msra.mxu0 %v1664
    %1686 = vmatprep.subr.bf16.mxu0 0
    %1687 = vmatpush1.bf16.msra.mxu0 %v1665
    %1688 = vmatprep.subr.bf16.mxu0 0
    %1689 = vmatpush1.bf16.msra.mxu0 %v1666
    %1690 = vmatprep.subr.bf16.mxu0 0
    %1691 = vmatpush1.bf16.msra.mxu0 %v1667
    %1692 = vmatprep.subr.bf16.mxu0 0
    %1693 = vmatpush1.bf16.msra.mxu0 0
    %1694 = vmatprep.subr.bf16.mxu0 0
    %1695 = vmatpush1.bf16.msra.mxu0 0
    %1696 = vmatprep.subr.bf16.mxu0 0
    %1697 = vmatpush1.bf16.msra.mxu0 0
    %1698 = vmatprep.subr.bf16.mxu0 0
    %1699 = vmatpush1.bf16.msra.mxu0 0
    %1700 = vmatprep.subr.bf16.mxu0 0
    %1701 = vmatpush1.bf16.msra.mxu0 0
    %1702 = vmatprep.subr.bf16.mxu0 0
    %1703 = vmatpush1.bf16.msra.mxu0 0
    %1704 = vmatprep.subr.bf16.mxu0 0
    %1705 = vmatpush1.bf16.msra.mxu0 0
    %1706 = vmatprep.subr.bf16.mxu0 0
    %1707 = vmatpush1.bf16.msra.mxu0 0
    %1708 = vmatprep.mubr.bf16.mxu0 0
    %1709 = vmatmul.mubr.bf16.gmra.mrb[0].mxu0 %v1626
    %v1710 = vpop.f32.mrb[0].mxu0
    %v1711 = vadd.f32 %v1627, %v1710
    %v1712 = vpop.f32.mrb[0].mxu0
    %v1713 = vpop.f32.mrb[0].mxu0
    %v1714 = vpop.f32.mrb[0].mxu0
    %1715 = vdwg.mxu0
    %v1716 = vmax.f32 %v1711, 0.0
    %v1717 = vld [vmem:[#allocation8] sm:$0xff]
    %v1718 = vld [vmem:[#allocation8 + $0x8] sm:$0xff]
    %v1719 = vld [vmem:[#allocation8 + $0x10] sm:$0xff]
    %v1720 = vld [vmem:[#allocation8 + $0x18] sm:$0xff]
    %v1721 = vld [vmem:[#allocation8 + $0x20] sm:$0xff]
    %v1722 = vld [vmem:[#allocation8 + $0x28] sm:$0xff]
    %v1723 = vld [vmem:[#allocation8 + $0x30] sm:$0xff]
    %v1724 = vld [vmem:[#allocation8 + $0x38] sm:$0xff]
    %v1725 = vld [vmem:[#allocation8 + $0x40] sm:$0xff]
    %v1726 = vld [vmem:[#allocation8 + $0x48] sm:$0xff]
    %v1727 = vld [vmem:[#allocation8 + $0x50] sm:$0xff]
    %v1728 = vld [vmem:[#allocation8 + $0x58] sm:$0xff]
    %v1729 = vld [vmem:[#allocation8 + $0x60] sm:$0xff]
    %v1730 = vld [vmem:[#allocation8 + $0x68] sm:$0xff]
    %v1731 = vld [vmem:[#allocation8 + $0x70] sm:$0xff]
    %v1732 = vld [vmem:[#allocation8 + $0x78] sm:$0xff]
    %v1733 = vld [vmem:[#allocation8 + $0x80] sm:$0xff]
    %v1734 = vld [vmem:[#allocation8 + $0x88] sm:$0xff]
    %v1735 = vld [vmem:[#allocation8 + $0x90] sm:$0xff]
    %v1736 = vld [vmem:[#allocation8 + $0x98] sm:$0xff]
    %v1737 = vld [vmem:[#allocation8 + $0xa0] sm:$0xff]
    %v1738 = vld [vmem:[#allocation8 + $0xa8] sm:$0xff]
    %v1739 = vld [vmem:[#allocation8 + $0xb0] sm:$0xff]
    %v1740 = vld [vmem:[#allocation8 + $0xb8] sm:$0xff]
    %v1741 = vld [vmem:[#allocation8 + $0xc0] sm:$0xff]
    %v1742 = vld [vmem:[#allocation8 + $0xc8] sm:$0xff]
    %v1743 = vld [vmem:[#allocation8 + $0xd0] sm:$0xff]
    %v1744 = vld [vmem:[#allocation8 + $0xd8] sm:$0xff]
    %v1745 = vld [vmem:[#allocation8 + $0xe0] sm:$0xff]
    %v1746 = vld [vmem:[#allocation8 + $0xe8] sm:$0xff]
    %v1747 = vld [vmem:[#allocation8 + $0xf0] sm:$0xff]
    %v1748 = vld [vmem:[#allocation8 + $0xf8] sm:$0xff]
    %v1749 = vld [vmem:[#allocation8 + $0x100] sm:$0xff]
    %v1750 = vld [vmem:[#allocation8 + $0x108] sm:$0xff]
    %v1751 = vld [vmem:[#allocation8 + $0x110] sm:$0xff]
    %v1752 = vld [vmem:[#allocation8 + $0x118] sm:$0xff]
    %v1753 = vld [vmem:[#allocation8 + $0x120] sm:$0xff]
    %v1754 = vld [vmem:[#allocation8 + $0x128] sm:$0xff]
    %v1755 = vld [vmem:[#allocation8 + $0x130] sm:$0xff]
    %v1756 = vld [vmem:[#allocation8 + $0x138] sm:$0xff]
    %v1757 = vld [vmem:[#allocation8 + $0x140] sm:$0xff]
    %v1758 = vld [vmem:[#allocation8 + $0x148] sm:$0xff]
    %v1759 = vld [vmem:[#allocation8 + $0x150] sm:$0xff]
    %v1760 = vld [vmem:[#allocation8 + $0x158] sm:$0xff]
    %v1761 = vld [vmem:[#allocation8 + $0x160] sm:$0xff]
    %v1762 = vld [vmem:[#allocation8 + $0x168] sm:$0xff]
    %v1763 = vld [vmem:[#allocation8 + $0x170] sm:$0xff]
    %v1764 = vld [vmem:[#allocation8 + $0x178] sm:$0xff]
    %v1765 = vld [vmem:[#allocation8 + $0x180] sm:$0xff]
    %v1766 = vld [vmem:[#allocation8 + $0x188] sm:$0xff]
    %v1767 = vld [vmem:[#allocation8 + $0x190] sm:$0xff]
    %v1768 = vld [vmem:[#allocation8 + $0x198] sm:$0xff]
    %v1769 = vld [vmem:[#allocation8 + $0x1a0] sm:$0xff]
    %v1770 = vld [vmem:[#allocation8 + $0x1a8] sm:$0xff]
    %v1771 = vld [vmem:[#allocation8 + $0x1b0] sm:$0xff]
    %v1772 = vld [vmem:[#allocation8 + $0x1b8] sm:$0xff]
    %v1773 = vld [vmem:[#allocation8 + $0x1c0] sm:$0xff]
    %v1774 = vld [vmem:[#allocation8 + $0x1c8] sm:$0xff]
    %v1775 = vld [vmem:[#allocation8 + $0x1d0] sm:$0xff]
    %v1776 = vld [vmem:[#allocation8 + $0x1d8] sm:$0xff]
    %v1777 = vld [vmem:[#allocation8 + $0x1e0] sm:$0xff]
    %v1778 = vld [vmem:[#allocation8 + $0x1e8] sm:$0xff]
    %v1779 = vld [vmem:[#allocation8 + $0x1f0] sm:$0xff]
    %v1780 = vld [vmem:[#allocation8 + $0x1f8] sm:$0xff]
    %v1781 = vpack.c.bf16 %v1716, %v1716
    %s1782 = scalar_lea.vmem [#allocation10], 65
    %v1783 = vld [vmem:[%s1782] ss:$8 sm:$0xf]
    %v1784 = vld [vmem:[%s1782] ss:$8 sm:$0xf0]
    %v1785 = vor.u32 %v1783, %v1784
    %v1787 = vlaneseq
    %v1788 = vshrl.u32 %v1787, 7
    %v1789 = vsub.s32 0, %v1788
    %v1790 = vrot.slane %v1785, %v1789
    %v1791 = vlaneseq
    %v1792 = vshrl.u32 %v1791, 7
    %v1793 = vsub.s32 1, %v1792
    %v1794 = vrot.slane %v1785, %v1793
    %v1795 = vlaneseq
    %v1796 = vshrl.u32 %v1795, 7
    %v1797 = vsub.s32 2, %v1796
    %v1798 = vrot.slane %v1785, %v1797
    %v1799 = vlaneseq
    %v1800 = vshrl.u32 %v1799, 7
    %v1801 = vsub.s32 3, %v1800
    %v1802 = vrot.slane %v1785, %v1801
    %v1803 = vlaneseq
    %v1804 = vshrl.u32 %v1803, 7
    %v1805 = vsub.s32 4, %v1804
    %v1806 = vrot.slane %v1785, %v1805
    %v1807 = vlaneseq
    %v1808 = vshrl.u32 %v1807, 7
    %v1809 = vsub.s32 5, %v1808
    %v1810 = vrot.slane %v1785, %v1809
    %v1811 = vlaneseq
    %v1812 = vshrl.u32 %v1811, 7
    %v1813 = vsub.s32 6, %v1812
    %v1814 = vrot.slane %v1785, %v1813
    %v1815 = vlaneseq
    %v1816 = vshrl.u32 %v1815, 7
    %v1817 = vsub.s32 7, %v1816
    %v1818 = vrot.slane %v1785, %v1817
    %v1891 = vunpack.c.l.b16 %v1717
    %v1892 = vunpack.c.h.b16 %v1717
    %v1893 = vunpack.c.l.b16 %v1718
    %v1894 = vunpack.c.h.b16 %v1718
    %v1895 = vunpack.c.l.b16 %v1719
    %v1896 = vunpack.c.h.b16 %v1719
    %v1897 = vunpack.c.l.b16 %v1720
    %v1898 = vunpack.c.h.b16 %v1720
    %v1899 = vunpack.c.l.b16 %v1721
    %v1900 = vunpack.c.h.b16 %v1721
    %v1901 = vunpack.c.l.b16 %v1722
    %v1902 = vunpack.c.h.b16 %v1722
    %v1903 = vunpack.c.l.b16 %v1723
    %v1904 = vunpack.c.h.b16 %v1723
    %v1905 = vunpack.c.l.b16 %v1724
    %v1906 = vunpack.c.h.b16 %v1724
    %v1907 = vunpack.c.l.b16 %v1725
    %v1908 = vunpack.c.h.b16 %v1725
    %v1909 = vunpack.c.l.b16 %v1726
    %v1910 = vunpack.c.h.b16 %v1726
    %v1911 = vunpack.c.l.b16 %v1727
    %v1912 = vunpack.c.h.b16 %v1727
    %v1913 = vunpack.c.l.b16 %v1728
    %v1914 = vunpack.c.h.b16 %v1728
    %v1915 = vunpack.c.l.b16 %v1729
    %v1916 = vunpack.c.h.b16 %v1729
    %v1917 = vunpack.c.l.b16 %v1730
    %v1918 = vunpack.c.h.b16 %v1730
    %v1919 = vunpack.c.l.b16 %v1731
    %v1920 = vunpack.c.h.b16 %v1731
    %v1921 = vunpack.c.l.b16 %v1732
    %v1922 = vunpack.c.h.b16 %v1732
    %v1923 = vunpack.c.l.b16 %v1733
    %v1924 = vunpack.c.h.b16 %v1733
    %v1925 = vunpack.c.l.b16 %v1734
    %v1926 = vunpack.c.h.b16 %v1734
    %v1927 = vunpack.c.l.b16 %v1735
    %v1928 = vunpack.c.h.b16 %v1735
    %v1929 = vunpack.c.l.b16 %v1736
    %v1930 = vunpack.c.h.b16 %v1736
    %v1931 = vunpack.c.l.b16 %v1737
    %v1932 = vunpack.c.h.b16 %v1737
    %v1933 = vunpack.c.l.b16 %v1738
    %v1934 = vunpack.c.h.b16 %v1738
    %v1935 = vunpack.c.l.b16 %v1739
    %v1936 = vunpack.c.h.b16 %v1739
    %v1937 = vunpack.c.l.b16 %v1740
    %v1938 = vunpack.c.h.b16 %v1740
    %v1939 = vunpack.c.l.b16 %v1741
    %v1940 = vunpack.c.h.b16 %v1741
    %v1941 = vunpack.c.l.b16 %v1742
    %v1942 = vunpack.c.h.b16 %v1742
    %v1943 = vunpack.c.l.b16 %v1743
    %v1944 = vunpack.c.h.b16 %v1743
    %v1945 = vunpack.c.l.b16 %v1744
    %v1946 = vunpack.c.h.b16 %v1744
    %v1947 = vunpack.c.l.b16 %v1745
    %v1948 = vunpack.c.h.b16 %v1745
    %v1949 = vunpack.c.l.b16 %v1746
    %v1950 = vunpack.c.h.b16 %v1746
    %v1951 = vunpack.c.l.b16 %v1747
    %v1952 = vunpack.c.h.b16 %v1747
    %v1953 = vunpack.c.l.b16 %v1748
    %v1954 = vunpack.c.h.b16 %v1748
    %v1955 = vunpack.c.l.b16 %v1749
    %v1956 = vunpack.c.h.b16 %v1749
    %v1957 = vunpack.c.l.b16 %v1750
    %v1958 = vunpack.c.h.b16 %v1750
    %v1959 = vunpack.c.l.b16 %v1751
    %v1960 = vunpack.c.h.b16 %v1751
    %v1961 = vunpack.c.l.b16 %v1752
    %v1962 = vunpack.c.h.b16 %v1752
    %v1963 = vunpack.c.l.b16 %v1753
    %v1964 = vunpack.c.h.b16 %v1753
    %v1965 = vunpack.c.l.b16 %v1754
    %v1966 = vunpack.c.h.b16 %v1754
    %v1967 = vunpack.c.l.b16 %v1755
    %v1968 = vunpack.c.h.b16 %v1755
    %v1969 = vunpack.c.l.b16 %v1756
    %v1970 = vunpack.c.h.b16 %v1756
    %v1971 = vunpack.c.l.b16 %v1757
    %v1972 = vunpack.c.h.b16 %v1757
    %v1973 = vunpack.c.l.b16 %v1758
    %v1974 = vunpack.c.h.b16 %v1758
    %v1975 = vunpack.c.l.b16 %v1759
    %v1976 = vunpack.c.h.b16 %v1759
    %v1977 = vunpack.c.l.b16 %v1760
    %v1978 = vunpack.c.h.b16 %v1760
    %v1979 = vunpack.c.l.b16 %v1761
    %v1980 = vunpack.c.h.b16 %v1761
    %v1981 = vunpack.c.l.b16 %v1762
    %v1982 = vunpack.c.h.b16 %v1762
    %v1983 = vunpack.c.l.b16 %v1763
    %v1984 = vunpack.c.h.b16 %v1763
    %v1985 = vunpack.c.l.b16 %v1764
    %v1986 = vunpack.c.h.b16 %v1764
    %v1987 = vunpack.c.l.b16 %v1765
    %v1988 = vunpack.c.h.b16 %v1765
    %v1989 = vunpack.c.l.b16 %v1766
    %v1990 = vunpack.c.h.b16 %v1766
    %v1991 = vunpack.c.l.b16 %v1767
    %v1992 = vunpack.c.h.b16 %v1767
    %v1993 = vunpack.c.l.b16 %v1768
    %v1994 = vunpack.c.h.b16 %v1768
    %v1995 = vunpack.c.l.b16 %v1769
    %v1996 = vunpack.c.h.b16 %v1769
    %v1997 = vunpack.c.l.b16 %v1770
    %v1998 = vunpack.c.h.b16 %v1770
    %v1999 = vunpack.c.l.b16 %v1771
    %v2000 = vunpack.c.h.b16 %v1771
    %v2001 = vunpack.c.l.b16 %v1772
    %v2002 = vunpack.c.h.b16 %v1772
    %v2003 = vunpack.c.l.b16 %v1773
    %v2004 = vunpack.c.h.b16 %v1773
    %v2005 = vunpack.c.l.b16 %v1774
    %v2006 = vunpack.c.h.b16 %v1774
    %v2007 = vunpack.c.l.b16 %v1775
    %v2008 = vunpack.c.h.b16 %v1775
    %v2009 = vunpack.c.l.b16 %v1776
    %v2010 = vunpack.c.h.b16 %v1776
    %v2011 = vunpack.c.l.b16 %v1777
    %v2012 = vunpack.c.h.b16 %v1777
    %v2013 = vunpack.c.l.b16 %v1778
    %v2014 = vunpack.c.h.b16 %v1778
    %v2015 = vunpack.c.l.b16 %v1779
    %v2016 = vunpack.c.h.b16 %v1779
    %v2017 = vunpack.c.l.b16 %v1780
    %v2018 = vunpack.c.h.b16 %v1780
    %v2019 = vpack.c.b16 %v1899, %v1891
    %v2020 = vpack.c.b16 %v1900, %v1892
    %v2021 = vpack.c.b16 %v1901, %v1893
    %v2022 = vpack.c.b16 %v1902, %v1894
    %v2023 = vpack.c.b16 %v1903, %v1895
    %v2024 = vpack.c.b16 %v1904, %v1896
    %v2025 = vpack.c.b16 %v1905, %v1897
    %v2026 = vpack.c.b16 %v1906, %v1898
    %v2027 = vpack.c.b16 %v1915, %v1907
    %v2028 = vpack.c.b16 %v1916, %v1908
    %v2029 = vpack.c.b16 %v1917, %v1909
    %v2030 = vpack.c.b16 %v1918, %v1910
    %v2031 = vpack.c.b16 %v1919, %v1911
    %v2032 = vpack.c.b16 %v1920, %v1912
    %v2033 = vpack.c.b16 %v1921, %v1913
    %v2034 = vpack.c.b16 %v1922, %v1914
    %v2035 = vpack.c.b16 %v1931, %v1923
    %v2036 = vpack.c.b16 %v1932, %v1924
    %v2037 = vpack.c.b16 %v1933, %v1925
    %v2038 = vpack.c.b16 %v1934, %v1926
    %v2039 = vpack.c.b16 %v1935, %v1927
    %v2040 = vpack.c.b16 %v1936, %v1928
    %v2041 = vpack.c.b16 %v1937, %v1929
    %v2042 = vpack.c.b16 %v1938, %v1930
    %v2043 = vpack.c.b16 %v1947, %v1939
    %v2044 = vpack.c.b16 %v1948, %v1940
    %v2045 = vpack.c.b16 %v1949, %v1941
    %v2046 = vpack.c.b16 %v1950, %v1942
    %v2047 = vpack.c.b16 %v1951, %v1943
    %v2048 = vpack.c.b16 %v1952, %v1944
    %v2049 = vpack.c.b16 %v1953, %v1945
    %v2050 = vpack.c.b16 %v1954, %v1946
    %v2051 = vpack.c.b16 %v1963, %v1955
    %v2052 = vpack.c.b16 %v1964, %v1956
    %v2053 = vpack.c.b16 %v1965, %v1957
    %v2054 = vpack.c.b16 %v1966, %v1958
    %v2055 = vpack.c.b16 %v1967, %v1959
    %v2056 = vpack.c.b16 %v1968, %v1960
    %v2057 = vpack.c.b16 %v1969, %v1961
    %v2058 = vpack.c.b16 %v1970, %v1962
    %v2059 = vpack.c.b16 %v1979, %v1971
    %v2060 = vpack.c.b16 %v1980, %v1972
    %v2061 = vpack.c.b16 %v1981, %v1973
    %v2062 = vpack.c.b16 %v1982, %v1974
    %v2063 = vpack.c.b16 %v1983, %v1975
    %v2064 = vpack.c.b16 %v1984, %v1976
    %v2065 = vpack.c.b16 %v1985, %v1977
    %v2066 = vpack.c.b16 %v1986, %v1978
    %v2067 = vpack.c.b16 %v1995, %v1987
    %v2068 = vpack.c.b16 %v1996, %v1988
    %v2069 = vpack.c.b16 %v1997, %v1989
    %v2070 = vpack.c.b16 %v1998, %v1990
    %v2071 = vpack.c.b16 %v1999, %v1991
    %v2072 = vpack.c.b16 %v2000, %v1992
    %v2073 = vpack.c.b16 %v2001, %v1993
    %v2074 = vpack.c.b16 %v2002, %v1994
    %v2075 = vpack.c.b16 %v2011, %v2003
    %v2076 = vpack.c.b16 %v2012, %v2004
    %v2077 = vpack.c.b16 %v2013, %v2005
    %v2078 = vpack.c.b16 %v2014, %v2006
    %v2079 = vpack.c.b16 %v2015, %v2007
    %v2080 = vpack.c.b16 %v2016, %v2008
    %v2081 = vpack.c.b16 %v2017, %v2009
    %v2082 = vpack.c.b16 %v2018, %v2010
    %2147 = vmatprep.subr.bf16.mxu0 %v2020
    %2148 = vmatpush1.bf16.msra.mxu0 %v2019
    %2149 = vmatprep.subr.bf16.mxu0 %v2028
    %2150 = vmatpush1.bf16.msra.mxu0 %v2027
    %2151 = vmatprep.subr.bf16.mxu0 %v2036
    %2152 = vmatpush1.bf16.msra.mxu0 %v2035
    %2153 = vmatprep.subr.bf16.mxu0 %v2044
    %2154 = vmatpush1.bf16.msra.mxu0 %v2043
    %2155 = vmatprep.subr.bf16.mxu0 %v2052
    %2156 = vmatpush1.bf16.msra.mxu0 %v2051
    %2157 = vmatprep.subr.bf16.mxu0 %v2060
    %2158 = vmatpush1.bf16.msra.mxu0 %v2059
    %2159 = vmatprep.subr.bf16.mxu0 %v2068
    %2160 = vmatpush1.bf16.msra.mxu0 %v2067
    %2161 = vmatprep.subr.bf16.mxu0 %v2076
    %2162 = vmatpush1.bf16.msra.mxu0 %v2075
    %2163 = vmatprep.subr.bf16.mxu0 0
    %2164 = vmatpush1.bf16.msra.mxu0 0
    %2165 = vmatprep.subr.bf16.mxu0 0
    %2166 = vmatpush1.bf16.msra.mxu0 0
    %2167 = vmatprep.subr.bf16.mxu0 0
    %2168 = vmatpush1.bf16.msra.mxu0 0
    %2169 = vmatprep.subr.bf16.mxu0 0
    %2170 = vmatpush1.bf16.msra.mxu0 0
    %2171 = vmatprep.subr.bf16.mxu0 0
    %2172 = vmatpush1.bf16.msra.mxu0 0
    %2173 = vmatprep.subr.bf16.mxu0 0
    %2174 = vmatpush1.bf16.msra.mxu0 0
    %2175 = vmatprep.subr.bf16.mxu0 0
    %2176 = vmatpush1.bf16.msra.mxu0 0
    %2177 = vmatprep.subr.bf16.mxu0 0
    %2178 = vmatpush1.bf16.msra.mxu0 0
    %2179 = vmatprep.mubr.bf16.mxu0 0
    %2180 = vmatmul.mubr.bf16.gmra.mrb[0].mxu0 %v1781
    %v2181 = vpop.f32.mrb[0].mxu0
    %v2182 = vadd.f32 %v1790, %v2181
    %v2183 = vpop.f32.mrb[0].mxu0
    %v2184 = vadd.f32 %v1794, %v2183
    %v2185 = vpop.f32.mrb[0].mxu0
    %v2186 = vpop.f32.mrb[0].mxu0
    %2187 = vdwg.mxu0
    %2188 = vmatprep.subr.bf16.mxu0 %v2022
    %2189 = vmatpush1.bf16.msra.mxu0 %v2021
    %2190 = vmatprep.subr.bf16.mxu0 %v2030
    %2191 = vmatpush1.bf16.msra.mxu0 %v2029
    %2192 = vmatprep.subr.bf16.mxu0 %v2038
    %2193 = vmatpush1.bf16.msra.mxu0 %v2037
    %2194 = vmatprep.subr.bf16.mxu0 %v2046
    %2195 = vmatpush1.bf16.msra.mxu0 %v2045
    %2196 = vmatprep.subr.bf16.mxu0 %v2054
    %2197 = vmatpush1.bf16.msra.mxu0 %v2053
    %2198 = vmatprep.subr.bf16.mxu0 %v2062
    %2199 = vmatpush1.bf16.msra.mxu0 %v2061
    %2200 = vmatprep.subr.bf16.mxu0 %v2070
    %2201 = vmatpush1.bf16.msra.mxu0 %v2069
    %2202 = vmatprep.subr.bf16.mxu0 %v2078
    %2203 = vmatpush1.bf16.msra.mxu0 %v2077
    %2204 = vmatprep.subr.bf16.mxu0 0
    %2205 = vmatpush1.bf16.msra.mxu0 0
    %2206 = vmatprep.subr.bf16.mxu0 0
    %2207 = vmatpush1.bf16.msra.mxu0 0
    %2208 = vmatprep.subr.bf16.mxu0 0
    %2209 = vmatpush1.bf16.msra.mxu0 0
    %2210 = vmatprep.subr.bf16.mxu0 0
    %2211 = vmatpush1.bf16.msra.mxu0 0
    %2212 = vmatprep.subr.bf16.mxu0 0
    %2213 = vmatpush1.bf16.msra.mxu0 0
    %2214 = vmatprep.subr.bf16.mxu0 0
    %2215 = vmatpush1.bf16.msra.mxu0 0
    %2216 = vmatprep.subr.bf16.mxu0 0
    %2217 = vmatpush1.bf16.msra.mxu0 0
    %2218 = vmatprep.subr.bf16.mxu0 0
    %2219 = vmatpush1.bf16.msra.mxu0 0
    %2220 = vmatprep.mubr.bf16.mxu0 0
    %2221 = vmatmul.mubr.bf16.gmra.mrb[0].mxu0 %v1781
    %v2222 = vpop.f32.mrb[0].mxu0
    %v2223 = vadd.f32 %v1798, %v2222
    %v2224 = vpop.f32.mrb[0].mxu0
    %v2225 = vadd.f32 %v1802, %v2224
    %v2226 = vpop.f32.mrb[0].mxu0
    %v2227 = vpop.f32.mrb[0].mxu0
    %2228 = vdwg.mxu0
    %2229 = vmatprep.subr.bf16.mxu0 %v2024
    %2230 = vmatpush1.bf16.msra.mxu0 %v2023
    %2231 = vmatprep.subr.bf16.mxu0 %v2032
    %2232 = vmatpush1.bf16.msra.mxu0 %v2031
    %2233 = vmatprep.subr.bf16.mxu0 %v2040
    %2234 = vmatpush1.bf16.msra.mxu0 %v2039
    %2235 = vmatprep.subr.bf16.mxu0 %v2048
    %2236 = vmatpush1.bf16.msra.mxu0 %v2047
    %2237 = vmatprep.subr.bf16.mxu0 %v2056
    %2238 = vmatpush1.bf16.msra.mxu0 %v2055
    %2239 = vmatprep.subr.bf16.mxu0 %v2064
    %2240 = vmatpush1.bf16.msra.mxu0 %v2063
    %2241 = vmatprep.subr.bf16.mxu0 %v2072
    %2242 = vmatpush1.bf16.msra.mxu0 %v2071
    %2243 = vmatprep.subr.bf16.mxu0 %v2080
    %2244 = vmatpush1.bf16.msra.mxu0 %v2079
    %2245 = vmatprep.subr.bf16.mxu0 0
    %2246 = vmatpush1.bf16.msra.mxu0 0
    %2247 = vmatprep.subr.bf16.mxu0 0
    %2248 = vmatpush1.bf16.msra.mxu0 0
    %2249 = vmatprep.subr.bf16.mxu0 0
    %2250 = vmatpush1.bf16.msra.mxu0 0
    %2251 = vmatprep.subr.bf16.mxu0 0
    %2252 = vmatpush1.bf16.msra.mxu0 0
    %2253 = vmatprep.subr.bf16.mxu0 0
    %2254 = vmatpush1.bf16.msra.mxu0 0
    %2255 = vmatprep.subr.bf16.mxu0 0
    %2256 = vmatpush1.bf16.msra.mxu0 0
    %2257 = vmatprep.subr.bf16.mxu0 0
    %2258 = vmatpush1.bf16.msra.mxu0 0
    %2259 = vmatprep.subr.bf16.mxu0 0
    %2260 = vmatpush1.bf16.msra.mxu0 0
    %2261 = vmatprep.mubr.bf16.mxu0 0
    %2262 = vmatmul.mubr.bf16.gmra.mrb[0].mxu0 %v1781
    %v2263 = vpop.f32.mrb[0].mxu0
    %v2264 = vadd.f32 %v1806, %v2263
    %v2265 = vpop.f32.mrb[0].mxu0
    %v2266 = vadd.f32 %v1810, %v2265
    %v2267 = vpop.f32.mrb[0].mxu0
    %v2268 = vpop.f32.mrb[0].mxu0
    %2269 = vdwg.mxu0
    %2270 = vmatprep.subr.bf16.mxu0 %v2026
    %2271 = vmatpush1.bf16.msra.mxu0 %v2025
    %2272 = vmatprep.subr.bf16.mxu0 %v2034
    %2273 = vmatpush1.bf16.msra.mxu0 %v2033
    %2274 = vmatprep.subr.bf16.mxu0 %v2042
    %2275 = vmatpush1.bf16.msra.mxu0 %v2041
    %2276 = vmatprep.subr.bf16.mxu0 %v2050
    %2277 = vmatpush1.bf16.msra.mxu0 %v2049
    %2278 = vmatprep.subr.bf16.mxu0 %v2058
    %2279 = vmatpush1.bf16.msra.mxu0 %v2057
    %2280 = vmatprep.subr.bf16.mxu0 %v2066
    %2281 = vmatpush1.bf16.msra.mxu0 %v2065
    %2282 = vmatprep.subr.bf16.mxu0 %v2074
    %2283 = vmatpush1.bf16.msra.mxu0 %v2073
    %2284 = vmatprep.subr.bf16.mxu0 %v2082
    %2285 = vmatpush1.bf16.msra.mxu0 %v2081
    %2286 = vmatprep.subr.bf16.mxu0 0
    %2287 = vmatpush1.bf16.msra.mxu0 0
    %2288 = vmatprep.subr.bf16.mxu0 0
    %2289 = vmatpush1.bf16.msra.mxu0 0
    %2290 = vmatprep.subr.bf16.mxu0 0
    %2291 = vmatpush1.bf16.msra.mxu0 0
    %2292 = vmatprep.subr.bf16.mxu0 0
    %2293 = vmatpush1.bf16.msra.mxu0 0
    %2294 = vmatprep.subr.bf16.mxu0 0
    %2295 = vmatpush1.bf16.msra.mxu0 0
    %2296 = vmatprep.subr.bf16.mxu0 0
    %2297 = vmatpush1.bf16.msra.mxu0 0
    %2298 = vmatprep.subr.bf16.mxu0 0
    %2299 = vmatpush1.bf16.msra.mxu0 0
    %2300 = vmatprep.subr.bf16.mxu0 0
    %2301 = vmatpush1.bf16.msra.mxu0 0
    %2302 = vmatprep.mubr.bf16.mxu0 0
    %2303 = vmatmul.mubr.bf16.gmra.mrb[0].mxu0 %v1781
    %v2304 = vpop.f32.mrb[0].mxu0
    %v2305 = vadd.f32 %v1814, %v2304
    %v2306 = vpop.f32.mrb[0].mxu0
    %v2307 = vadd.f32 %v1818, %v2306
    %v2308 = vpop.f32.mrb[0].mxu0
    %v2309 = vpop.f32.mrb[0].mxu0
    %2310 = vdwg.mxu0
    %v2311 = vsub.f32 0.0, %v2182
    %v2312 = vsub.f32 0.0, %v2184
    %v2313 = vsub.f32 0.0, %v2223
    %v2314 = vsub.f32 0.0, %v2225
    %v2315 = vsub.f32 0.0, %v2264
    %v2316 = vsub.f32 0.0, %v2266
    %v2317 = vsub.f32 0.0, %v2305
    %v2318 = vsub.f32 0.0, %v2307
    %v2319 = vmul.f32 %v2311, 1.442695
    %v2320 = vpow.pop %v2319
    %v2321 = vmul.f32 %v2312, 1.442695
    %v2322 = vpow.pop %v2321
    %v2323 = vmul.f32 %v2313, 1.442695
    %v2324 = vpow.pop %v2323
    %v2325 = vmul.f32 %v2314, 1.442695
    %v2326 = vpow.pop %v2325
    %v2327 = vmul.f32 %v2315, 1.442695
    %v2328 = vpow.pop %v2327
    %v2329 = vmul.f32 %v2316, 1.442695
    %v2330 = vpow.pop %v2329
    %v2331 = vmul.f32 %v2317, 1.442695
    %v2332 = vpow.pop %v2331
    %v2333 = vmul.f32 %v2318, 1.442695
    %v2334 = vpow.pop %v2333
    %v2335 = vadd.f32 %v2320, 1.0
    %v2336 = vadd.f32 %v2322, 1.0
    %v2337 = vadd.f32 %v2324, 1.0
    %v2338 = vadd.f32 %v2326, 1.0
    %v2339 = vadd.f32 %v2328, 1.0
    %v2340 = vadd.f32 %v2330, 1.0
    %v2341 = vadd.f32 %v2332, 1.0
    %v2342 = vadd.f32 %v2334, 1.0
    %v2343 = vrcp.pop %v2335
    %v2344 = vrcp.pop %v2336
    %v2345 = vrcp.pop %v2337
    %v2346 = vrcp.pop %v2338
    %v2347 = vrcp.pop %v2339
    %v2348 = vrcp.pop %v2340
    %v2349 = vrcp.pop %v2341
    %v2350 = vrcp.pop %v2342
    %v2351 = vmax.f32 %v2343, 0.0
    %v2352 = vmax.f32 %v2344, 0.0
    %v2353 = vmax.f32 %v2345, 0.0
    %v2354 = vmax.f32 %v2346, 0.0
    %v2355 = vmax.f32 %v2347, 0.0
    %v2356 = vmax.f32 %v2348, 0.0
    %v2357 = vmax.f32 %v2349, 0.0
    %v2358 = vmax.f32 %v2350, 0.0
    %v2359 = vmin.f32 %v2351, 1.0
    %v2360 = vmin.f32 %v2352, 1.0
    %v2361 = vmin.f32 %v2353, 1.0
    %v2362 = vmin.f32 %v2354, 1.0
    %v2363 = vmin.f32 %v2355, 1.0
    %v2364 = vmin.f32 %v2356, 1.0
    %v2365 = vmin.f32 %v2357, 1.0
    %v2366 = vmin.f32 %v2358, 1.0
    %2367 = vst [vmem:[#allocation11] sm:$0xff] %v2359
    %2368 = vst [vmem:[#allocation11 + $0x8] sm:$0xff] %v2360
    %2369 = vst [vmem:[#allocation11 + $0x10] sm:$0xff] %v2361
    %2370 = vst [vmem:[#allocation11 + $0x18] sm:$0xff] %v2362
    %2371 = vst [vmem:[#allocation11 + $0x20] sm:$0xff] %v2363
    %2372 = vst [vmem:[#allocation11 + $0x28] sm:$0xff] %v2364
    %2373 = vst [vmem:[#allocation11 + $0x30] sm:$0xff] %v2365
    %2374 = vst [vmem:[#allocation11 + $0x38] sm:$0xff] %v2366
    %2375 = vst [vmem:[%s9] sm:$0xff] %v1275
    %2376 = vst [vmem:[%s9 + $0x8] sm:$0xff] %v1277
    // Predicated region
    $region54: #{vae_mlp_forward.1} parent=1 // pred_check
      _
    $region55: #{vae_mlp_forward.1} parent=1 // pred_check_branch
      %2378 = sbr.rel (0) target = $region57
    $region56: #{vae_mlp_forward.1} parent=1 // pred_region
      %s2380 = ssub.s32 1024, 1024
      %2381 = vsyncadd [#allocation4], %s2380
      %s2383 = sshll.u32 [#allocation11], 4
      %s2384 = int_to_ptr.vmem [resolvable:$true] %s2383
      %2386 = dma.vmem_to_hbm [thread:$0]  %s2384, 1024, %s8, [#allocation4]
    $region57: #{vae_mlp_forward.1} parent=1 // pred_fallthru
      _
    // Predicated region
    $region58: #{vae_mlp_forward.1} parent=1 // pred_check
      _
    $region59: #{vae_mlp_forward.1} parent=1 // pred_check_branch
      %2388 = sbr.rel (0) target = $region61
    $region60: #{vae_mlp_forward.1} parent=1 // pred_region
      _
    $region61: #{vae_mlp_forward.1} parent=1 // pred_fallthru
      _
    // Predicated region
    $region62: #{vae_mlp_forward.1} parent=1 // pred_check
      _
    $region63: #{vae_mlp_forward.1} parent=1 // pred_check_branch
      %2390 = sbr.rel (0) target = $region65
    $region64: #{vae_mlp_forward.1} parent=1 // pred_region
      %2391 = dma.done [#allocation4], 1024
    $region65: #{vae_mlp_forward.1} parent=1 // pred_fallthru
      _
    // Predicated region
    $region66: #{vae_mlp_forward.1} parent=1 // pred_check
      _
    $region67: #{vae_mlp_forward.1} parent=1 // pred_check_branch
      %2393 = sbr.rel (0) target = $region69
    $region68: #{vae_mlp_forward.1} parent=1 // pred_region
      _
    $region69: #{vae_mlp_forward.1} parent=1 // pred_fallthru
      _
    %2394 = vsyncpa [#allocation3], 1
    %2395 = vsyncpa [#allocation6], 1
    %2396 = vsyncpa [#allocation9], 1
    %2397 = vsyncpa [#allocation4], 1

</llo_original>
